<compile_context>
chip_gen: v5e
topology: v5e:2x2
jax: 0.10.0
libtpu: 0.0.40
codegen_flags: <defaults>
</compile_context>

<pallas_src>
import math
from functools import partial

import jax
import jax.numpy as jnp
from jax.experimental import pallas as pl
from jax.experimental.pallas import tpu as pltpu


# ---------------------------------------------------------------------------
# in-kernel helpers
# ---------------------------------------------------------------------------
def _layernorm(y, gamma, beta, eps=1e-5):
    mean = jnp.mean(y, axis=-1, keepdims=True)
    var = jnp.mean((y - mean) ** 2, axis=-1, keepdims=True)
    return (y - mean) * jax.lax.rsqrt(var + eps) * gamma + beta


def _mha_block(x_q, x_kv, mask, wq, wk, wv, wo, gamma, beta, d_k):
    """One multi-head attention block for a single batch element.

    x_q   : (Lq, D)  f32
    x_kv  : (Lk, D)  f32
    mask  : (Lq, Lk) f32, value > 0 means "masked"
    wq/wk : (H, D, d_k) bf16,  wv: (H, D, d_v) bf16,  wo: (H, d_v, D) bf16
    Returns (layernorm(x_q + proj), attn) with attn of shape (H, Lq, Lk) f32.
    """
    H = wq.shape[0]
    xq_b = jnp.broadcast_to(x_q.astype(jnp.bfloat16)[None], (H,) + x_q.shape)
    xkv_b = jnp.broadcast_to(x_kv.astype(jnp.bfloat16)[None], (H,) + x_kv.shape)

    # Head-batched projections: batched NN matmuls, bf16 operands, f32 accumulation.
    q = jnp.einsum('hld,hdk->hlk', xq_b, wq, preferred_element_type=jnp.float32)
    k = jnp.einsum('hld,hdk->hlk', xkv_b, wk, preferred_element_type=jnp.float32)
    v = jnp.einsum('hld,hdk->hlk', xkv_b, wv, preferred_element_type=jnp.float32)

    # Scores via NT batched matmul -- no explicit transpose of K.
    s = jnp.einsum('hqd,hkd->hqk', q.astype(jnp.bfloat16), k.astype(jnp.bfloat16),
                   preferred_element_type=jnp.float32)
    s = s * (1.0 / math.sqrt(d_k))
    s = jnp.where(mask[None, :, :] > 0.0, -1e9, s)    # masked_fill_(mask, -1e9)

    # Softmax in f32; normalization via EUP approximate reciprocal (frees VALU).
    m = jnp.max(s, axis=-1, keepdims=True)
    e = jnp.exp(s - m)
    denom = jnp.sum(e, axis=-1, keepdims=True)
    attn = e * pl.reciprocal(denom, approx=True)

    ctx = jnp.einsum('hqk,hkd->hqd', attn.astype(jnp.bfloat16),
                     v.astype(jnp.bfloat16), preferred_element_type=jnp.float32)
    # Output projection with head-major W_O, then sum over heads
    # (== concat(heads) @ W_O, without the lane-crossing concatenate).
    proj = jnp.einsum('hqd,hdm->hqm', ctx.astype(jnp.bfloat16), wo,
                      preferred_element_type=jnp.float32)
    proj = jnp.sum(proj, axis=0)                      # (Lq, D)

    y = proj + x_q                                    # residual in f32
    return _layernorm(y, gamma, beta), attn


# ---------------------------------------------------------------------------
# Fused decoder-layer kernel (one batch element per grid step)
# ---------------------------------------------------------------------------
def decoder_layer_kernel(dec_ref, enc_ref, mself_ref, menc_ref,
                         wq1_ref, wk1_ref, wv1_ref, wo1_ref, g1_ref, b1_ref,
                         wq2_ref, wk2_ref, wv2_ref, wo2_ref, g2_ref, b2_ref,
                         w1_ref, w2_ref, g3_ref, b3_ref,
                         out_ref, attn1_ref, attn2_ref, *, d_k):
    x = dec_ref[0]          # (TGT, D) f32
    enc = enc_ref[0]        # (SRC, D) f32

    # 1) masked self-attention
    h1, a1 = _mha_block(x, x, mself_ref[0],
                        wq1_ref[...], wk1_ref[...], wv1_ref[...], wo1_ref[...],
                        g1_ref[...], b1_ref[...], d_k)
    attn1_ref[0] = a1

    # 2) encoder-decoder attention (h1 never leaves VMEM/vregs)
    h2, a2 = _mha_block(h1, enc, menc_ref[0],
                        wq2_ref[...], wk2_ref[...], wv2_ref[...], wo2_ref[...],
                        g2_ref[...], b2_ref[...], d_k)
    attn2_ref[0] = a2

    # 3) position-wise FFN (+ residual + LayerNorm)
    f = jnp.dot(h2.astype(jnp.bfloat16), w1_ref[...],
                preferred_element_type=jnp.float32)
    f = jnp.maximum(f, 0.0)                           # ReLU in f32
    y = jnp.dot(f.astype(jnp.bfloat16), w2_ref[...],
                preferred_element_type=jnp.float32) + h2
    out_ref[0] = _layernorm(y, g3_ref[...], b3_ref[...])


# ---------------------------------------------------------------------------
# Wrapper: weight re-layout (head-major, bf16) + single pallas_call
# ---------------------------------------------------------------------------
def _prep_attn_params(p, n_heads, d_k, d_v):
    wq, wk, wv, wo, gamma, beta = p
    D = wq.shape[0]
    # (D, H*dk) -> (H, D, dk) head-major, bf16 (layout plumbing done in the wrapper).
    wq_h = wq.reshape(D, n_heads, d_k).transpose(1, 0, 2).astype(jnp.bfloat16)
    wk_h = wk.reshape(D, n_heads, d_k).transpose(1, 0, 2).astype(jnp.bfloat16)
    wv_h = wv.reshape(D, n_heads, d_v).transpose(1, 0, 2).astype(jnp.bfloat16)
    wo_h = wo.reshape(n_heads, d_v, D).astype(jnp.bfloat16)
    return wq_h, wk_h, wv_h, wo_h, gamma, beta


def decoder_layer(dec_inputs, enc_outputs, dec_self_attn_mask, dec_enc_attn_mask,
                  params, *, n_heads, d_k, d_v):
    self_p, enc_p, ffn_p = params
    B, TGT, D = dec_inputs.shape
    SRC = enc_outputs.shape[1]
    d_ff = ffn_p[0].shape[1]

    wq1, wk1, wv1, wo1, g1, b1 = _prep_attn_params(self_p, n_heads, d_k, d_v)
    wq2, wk2, wv2, wo2, g2, b2 = _prep_attn_params(enc_p, n_heads, d_k, d_v)
    w1, w2, g3, b3 = ffn_p
    w1 = w1.astype(jnp.bfloat16)
    w2 = w2.astype(jnp.bfloat16)

    in_arrays = (dec_inputs, enc_outputs, dec_self_attn_mask, dec_enc_attn_mask,
                 wq1, wk1, wv1, wo1, g1, b1,
                 wq2, wk2, wv2, wo2, g2, b2,
                 w1, w2, g3, b3)

    def per_batch(L, W):
        return pl.BlockSpec((1, L, W), lambda b: (b, 0, 0))

    def whole(arr):
        nd = arr.ndim
        return pl.BlockSpec(arr.shape, lambda b, _nd=nd: (0,) * _nd)

    in_specs = [per_batch(TGT, D), per_batch(SRC, D),
                per_batch(TGT, TGT), per_batch(TGT, SRC)]
    in_specs += [whole(a) for a in in_arrays[4:]]

    out_shape = (jax.ShapeDtypeStruct((B, TGT, D), jnp.float32),
                 jax.ShapeDtypeStruct((B, n_heads, TGT, TGT), jnp.float32),
                 jax.ShapeDtypeStruct((B, n_heads, TGT, SRC), jnp.float32))
    out_specs = (pl.BlockSpec((1, TGT, D), lambda b: (b, 0, 0)),
                 pl.BlockSpec((1, n_heads, TGT, TGT), lambda b: (b, 0, 0, 0)),
                 pl.BlockSpec((1, n_heads, TGT, SRC), lambda b: (b, 0, 0, 0)))

    # Advisory cost estimate for the XLA scheduler.
    def mha_flops(Lq, Lk):
        return 2 * n_heads * (Lq * D * d_k + Lk * D * d_k + Lk * D * d_v
                              + Lq * Lk * (d_k + d_v) + Lq * d_v * D)
    flops = B * (mha_flops(TGT, TGT) + mha_flops(TGT, SRC) + 4 * TGT * D * d_ff)
    transcendentals = B * n_heads * TGT * (TGT + SRC)
    bytes_accessed = sum(int(a.size) * a.dtype.itemsize for a in in_arrays)
    bytes_accessed += sum(math.prod(s.shape) * s.dtype.itemsize for s in out_shape)

    kernel = partial(decoder_layer_kernel, d_k=d_k)
    return pl.pallas_call(
        kernel,
        out_shape=out_shape,
        grid=(B,),
        in_specs=in_specs,
        out_specs=out_specs,
        compiler_params=pltpu.CompilerParams(
            dimension_semantics=("parallel",),
            vmem_limit_bytes=32 * 1024 * 1024),
        cost_estimate=pl.CostEstimate(flops=int(flops),
                                      transcendentals=int(transcendentals),
                                      bytes_accessed=int(bytes_accessed)),
    )(*in_arrays)


# ---------------------------------------------------------------------------
# Pure-JAX reference (mirrors the PyTorch module; cast=True mirrors the kernel's
# bf16-operand / f32-accumulate mixed precision so tolerances can stay tight).
# ---------------------------------------------------------------------------
def _mha_ref(xq, xk, xv, mask, p, n_heads, d_k, d_v, cast=True):
    wq, wk, wv, wo, g, b = p
    B, Lq, D = xq.shape
    Lk = xk.shape[1]
    c = (lambda a: a.astype(jnp.bfloat16)) if cast else (lambda a: a)
    f32 = jnp.float32
    Q = jnp.dot(c(xq), c(wq), preferred_element_type=f32) \
        .reshape(B, Lq, n_heads, d_k).transpose(0, 2, 1, 3)
    K = jnp.dot(c(xk), c(wk), preferred_element_type=f32) \
        .reshape(B, Lk, n_heads, d_k).transpose(0, 2, 1, 3)
    V = jnp.dot(c(xv), c(wv), preferred_element_type=f32) \
        .reshape(B, Lk, n_heads, d_v).transpose(0, 2, 1, 3)
    s = jnp.einsum('bhqd,bhkd->bhqk', c(Q), c(K),
                   preferred_element_type=f32) / math.sqrt(d_k)
    s = jnp.where(mask[:, None] > 0, -1e9, s)
    a = jax.nn.softmax(s, axis=-1)
    ctx = jnp.einsum('bhqk,bhkd->bhqd', c(a), c(V), preferred_element_type=f32)
    ctx = ctx.transpose(0, 2, 1, 3).reshape(B, Lq, n_heads * d_v)
    y = jnp.dot(c(ctx), c(wo), preferred_element_type=f32) + xq
    return _layernorm(y, g, b), a


def _decoder_layer_ref(dec, enc, m_self, m_enc, params, n_heads, d_k, d_v, cast=True):
    self_p, enc_p, ffn_p = params
    c = (lambda a: a.astype(jnp.bfloat16)) if cast else (lambda a: a)
    o, a1 = _mha_ref(dec, dec, dec, m_self, self_p, n_heads, d_k, d_v, cast)
    o, a2 = _mha_ref(o, enc, enc, m_enc, enc_p, n_heads, d_k, d_v, cast)
    w1, w2, g, b = ffn_p
    h = jnp.maximum(jnp.dot(c(o), c(w1), preferred_element_type=jnp.float32), 0.0)
    y = jnp.dot(c(h), c(w2), preferred_element_type=jnp.float32) + o
    return _layernorm(y, g, b), a1, a2


# ---------------------------------------------------------------------------
# main
# ---------------------------------------------------------------------------
if __name__ == "__main__":
    B, TGT, SRC = 2, 8, 8
    D_MODEL, D_K, D_V, N_HEADS, D_FF = 32, 8, 8, 4, 64

    key = jax.random.PRNGKey(0)
    k_in, k_enc, *kw = jax.random.split(key, 13)

    def lin(k, i, o):
        return jax.random.normal(k, (i, o), jnp.float32) * 0.1

    self_attn_params = (lin(kw[0], D_MODEL, N_HEADS * D_K),
                        lin(kw[1], D_MODEL, N_HEADS * D_K),
                        lin(kw[2], D_MODEL, N_HEADS * D_V),
                        lin(kw[3], N_HEADS * D_V, D_MODEL),
                        jnp.ones((1, D_MODEL), jnp.float32),
                        jnp.zeros((1, D_MODEL), jnp.float32))
    enc_attn_params = (lin(kw[4], D_MODEL, N_HEADS * D_K),
                       lin(kw[5], D_MODEL, N_HEADS * D_K),
                       lin(kw[6], D_MODEL, N_HEADS * D_V),
                       lin(kw[7], N_HEADS * D_V, D_MODEL),
                       jnp.ones((1, D_MODEL), jnp.float32),
                       jnp.zeros((1, D_MODEL), jnp.float32))
    ffn_params = (lin(kw[8], D_MODEL, D_FF),
                  lin(kw[9], D_FF, D_MODEL),
                  jnp.ones((1, D_MODEL), jnp.float32),
                  jnp.zeros((1, D_MODEL), jnp.float32))
    params = (self_attn_params, enc_attn_params, ffn_params)

    dec_inputs = jax.random.normal(k_in, (B, TGT, D_MODEL), jnp.float32)
    enc_outputs = jax.random.normal(k_enc, (B, SRC, D_MODEL), jnp.float32)
    # causal self-attention mask (1.0 == masked position), zero mask for enc-dec.
    # (If a row were ever fully masked, softmax yields uniform probs, same as ref.)
    causal = jnp.triu(jnp.ones((TGT, TGT), jnp.float32), k=1)
    dec_self_attn_mask = jnp.broadcast_to(causal, (B, TGT, TGT))
    dec_enc_attn_mask = jnp.zeros((B, TGT, SRC), jnp.float32)

    run = jax.jit(partial(decoder_layer, n_heads=N_HEADS, d_k=D_K, d_v=D_V))
    dec_out, self_attn, enc_attn = run(dec_inputs, enc_outputs,
                                       dec_self_attn_mask, dec_enc_attn_mask,
                                       params)
    jax.block_until_ready((dec_out, self_attn, enc_attn))

    ref_out, ref_a1, ref_a2 = _decoder_layer_ref(
        dec_inputs, enc_outputs, dec_self_attn_mask, dec_enc_attn_mask,
        params, N_HEADS, D_K, D_V, cast=True)

    assert jnp.allclose(dec_out, ref_out, atol=2e-2, rtol=2e-2)
    assert jnp.allclose(self_attn, ref_a1, atol=1e-2, rtol=1e-2)
    assert jnp.allclose(enc_attn, ref_a2, atol=1e-2, rtol=1e-2)
    print("KERNEL_OK")
</pallas_src>

<mosaic_0001>
module attributes {stable_mosaic.version = 11 : i64} {
  func.func @decoder_layer_kernel(%arg0: i32, %arg1: memref<1x8x32xf32, #tpu.memory_space<vmem>>, %arg2: memref<1x8x32xf32, #tpu.memory_space<vmem>>, %arg3: memref<1x8x8xf32, #tpu.memory_space<vmem>>, %arg4: memref<1x8x8xf32, #tpu.memory_space<vmem>>, %arg5: memref<4x32x8xbf16, #tpu.memory_space<vmem>>, %arg6: memref<4x32x8xbf16, #tpu.memory_space<vmem>>, %arg7: memref<4x32x8xbf16, #tpu.memory_space<vmem>>, %arg8: memref<4x8x32xbf16, #tpu.memory_space<vmem>>, %arg9: memref<1x32xf32, #tpu.memory_space<vmem>>, %arg10: memref<1x32xf32, #tpu.memory_space<vmem>>, %arg11: memref<4x32x8xbf16, #tpu.memory_space<vmem>>, %arg12: memref<4x32x8xbf16, #tpu.memory_space<vmem>>, %arg13: memref<4x32x8xbf16, #tpu.memory_space<vmem>>, %arg14: memref<4x8x32xbf16, #tpu.memory_space<vmem>>, %arg15: memref<1x32xf32, #tpu.memory_space<vmem>>, %arg16: memref<1x32xf32, #tpu.memory_space<vmem>>, %arg17: memref<32x64xbf16, #tpu.memory_space<vmem>>, %arg18: memref<64x32xbf16, #tpu.memory_space<vmem>>, %arg19: memref<1x32xf32, #tpu.memory_space<vmem>>, %arg20: memref<1x32xf32, #tpu.memory_space<vmem>>, %arg21: memref<1x8x32xf32, #tpu.memory_space<vmem>>, %arg22: memref<1x4x8x8xf32, #tpu.memory_space<vmem>>, %arg23: memref<1x4x8x8xf32, #tpu.memory_space<vmem>>) attributes {dimension_semantics = [#tpu.dimension_semantics<parallel>], iteration_bounds = array<i64: 2>, scalar_prefetch = 0 : i64, scratch_operands = 0 : i64, tpu.core_type = #tpu.core_type<tc>, window_params = [{transform_indices = @transform_0, window_bounds = array<i64: 1, 8, 32>}, {transform_indices = @transform_1, window_bounds = array<i64: 1, 8, 32>}, {transform_indices = @transform_2, window_bounds = array<i64: 1, 8, 8>}, {transform_indices = @transform_3, window_bounds = array<i64: 1, 8, 8>}, {pipeline_mode = #tpu.pipeline_mode<synchronous>, transform_indices = @transform_4, window_bounds = array<i64: 4, 32, 8>}, {pipeline_mode = #tpu.pipeline_mode<synchronous>, transform_indices = @transform_5, window_bounds = array<i64: 4, 32, 8>}, {pipeline_mode = #tpu.pipeline_mode<synchronous>, transform_indices = @transform_6, window_bounds = array<i64: 4, 32, 8>}, {pipeline_mode = #tpu.pipeline_mode<synchronous>, transform_indices = @transform_7, window_bounds = array<i64: 4, 8, 32>}, {pipeline_mode = #tpu.pipeline_mode<synchronous>, transform_indices = @transform_8, window_bounds = array<i64: 1, 32>}, {pipeline_mode = #tpu.pipeline_mode<synchronous>, transform_indices = @transform_9, window_bounds = array<i64: 1, 32>}, {pipeline_mode = #tpu.pipeline_mode<synchronous>, transform_indices = @transform_10, window_bounds = array<i64: 4, 32, 8>}, {pipeline_mode = #tpu.pipeline_mode<synchronous>, transform_indices = @transform_11, window_bounds = array<i64: 4, 32, 8>}, {pipeline_mode = #tpu.pipeline_mode<synchronous>, transform_indices = @transform_12, window_bounds = array<i64: 4, 32, 8>}, {pipeline_mode = #tpu.pipeline_mode<synchronous>, transform_indices = @transform_13, window_bounds = array<i64: 4, 8, 32>}, {pipeline_mode = #tpu.pipeline_mode<synchronous>, transform_indices = @transform_14, window_bounds = array<i64: 1, 32>}, {pipeline_mode = #tpu.pipeline_mode<synchronous>, transform_indices = @transform_15, window_bounds = array<i64: 1, 32>}, {pipeline_mode = #tpu.pipeline_mode<synchronous>, transform_indices = @transform_16, window_bounds = array<i64: 32, 64>}, {pipeline_mode = #tpu.pipeline_mode<synchronous>, transform_indices = @transform_17, window_bounds = array<i64: 64, 32>}, {pipeline_mode = #tpu.pipeline_mode<synchronous>, transform_indices = @transform_18, window_bounds = array<i64: 1, 32>}, {pipeline_mode = #tpu.pipeline_mode<synchronous>, transform_indices = @transform_19, window_bounds = array<i64: 1, 32>}, {transform_indices = @transform_20, window_bounds = array<i64: 1, 8, 32>}, {transform_indices = @transform_21, window_bounds = array<i64: 1, 4, 8, 8>}, {transform_indices = @transform_22, window_bounds = array<i64: 1, 4, 8, 8>}]} {
    %c0 = arith.constant 0 : index
    %c0_0 = arith.constant 0 : index
    %c0_1 = arith.constant 0 : index
    %0 = vector.load %arg1[%c0, %c0_0, %c0_1] : memref<1x8x32xf32, #tpu.memory_space<vmem>>, vector<1x8x32xf32>
    %1 = vector.shape_cast %0 : vector<1x8x32xf32> to vector<8x32xf32>
    %c0_2 = arith.constant 0 : index
    %c0_3 = arith.constant 0 : index
    %c0_4 = arith.constant 0 : index
    %2 = vector.load %arg2[%c0_2, %c0_3, %c0_4] : memref<1x8x32xf32, #tpu.memory_space<vmem>>, vector<1x8x32xf32>
    %3 = vector.shape_cast %2 : vector<1x8x32xf32> to vector<8x32xf32>
    %c0_5 = arith.constant 0 : index
    %c0_6 = arith.constant 0 : index
    %c0_7 = arith.constant 0 : index
    %4 = vector.load %arg3[%c0_5, %c0_6, %c0_7] : memref<1x8x8xf32, #tpu.memory_space<vmem>>, vector<1x8x8xf32>
    %5 = vector.shape_cast %4 : vector<1x8x8xf32> to vector<8x8xf32>
    %c0_8 = arith.constant 0 : index
    %c0_9 = arith.constant 0 : index
    %c0_10 = arith.constant 0 : index
    %6 = vector.load %arg5[%c0_8, %c0_9, %c0_10] : memref<4x32x8xbf16, #tpu.memory_space<vmem>>, vector<4x32x8xbf16>
    %c0_11 = arith.constant 0 : index
    %c0_12 = arith.constant 0 : index
    %c0_13 = arith.constant 0 : index
    %7 = vector.load %arg6[%c0_11, %c0_12, %c0_13] : memref<4x32x8xbf16, #tpu.memory_space<vmem>>, vector<4x32x8xbf16>
    %c0_14 = arith.constant 0 : index
    %c0_15 = arith.constant 0 : index
    %c0_16 = arith.constant 0 : index
    %8 = vector.load %arg7[%c0_14, %c0_15, %c0_16] : memref<4x32x8xbf16, #tpu.memory_space<vmem>>, vector<4x32x8xbf16>
    %c0_17 = arith.constant 0 : index
    %c0_18 = arith.constant 0 : index
    %c0_19 = arith.constant 0 : index
    %9 = vector.load %arg8[%c0_17, %c0_18, %c0_19] : memref<4x8x32xbf16, #tpu.memory_space<vmem>>, vector<4x8x32xbf16>
    %c0_20 = arith.constant 0 : index
    %c0_21 = arith.constant 0 : index
    %10 = vector.load %arg9[%c0_20, %c0_21] : memref<1x32xf32, #tpu.memory_space<vmem>>, vector<1x32xf32>
    %c0_22 = arith.constant 0 : index
    %c0_23 = arith.constant 0 : index
    %11 = vector.load %arg10[%c0_22, %c0_23] : memref<1x32xf32, #tpu.memory_space<vmem>>, vector<1x32xf32>
    %12 = arith.truncf %1 : vector<8x32xf32> to vector<8x32xbf16>
    %13 = vector.shape_cast %12 : vector<8x32xbf16> to vector<1x8x32xbf16>
    %14 = vector.shape_cast %13 : vector<1x8x32xbf16> to vector<1x8x32xbf16>
    %15 = vector.broadcast %14 : vector<1x8x32xbf16> to vector<4x8x32xbf16>
    %16 = arith.truncf %1 : vector<8x32xf32> to vector<8x32xbf16>
    %17 = vector.shape_cast %16 : vector<8x32xbf16> to vector<1x8x32xbf16>
    %18 = vector.shape_cast %17 : vector<1x8x32xbf16> to vector<1x8x32xbf16>
    %19 = vector.broadcast %18 : vector<1x8x32xbf16> to vector<4x8x32xbf16>
    "tpu.trace_start"() <{level = 10 : i32, message = "hld,hdk->hlk"}> : () -> ()
    %cst = arith.constant dense<0.000000e+00> : vector<4x8x8xf32>
    %20 = tpu.matmul %15, %6, %cst {dimension_numbers = #tpu.dot_dimension_numbers<[2], [1], [1], [2], [0, 0, 0, 1, 1, 2], [0], [0]>} : vector<4x8x32xbf16>, vector<4x32x8xbf16>, vector<4x8x8xf32> -> vector<4x8x8xf32>
    %cst_24 = arith.constant dense<0.000000e+00> : vector<4x8x8xf32>
    %21 = tpu.matmul %19, %7, %cst_24 {dimension_numbers = #tpu.dot_dimension_numbers<[2], [1], [1], [2], [0, 0, 0, 1, 1, 2], [0], [0]>} : vector<4x8x32xbf16>, vector<4x32x8xbf16>, vector<4x8x8xf32> -> vector<4x8x8xf32>
    %cst_25 = arith.constant dense<0.000000e+00> : vector<4x8x8xf32>
    %22 = tpu.matmul %19, %8, %cst_25 {dimension_numbers = #tpu.dot_dimension_numbers<[2], [1], [1], [2], [0, 0, 0, 1, 1, 2], [0], [0]>} : vector<4x8x32xbf16>, vector<4x32x8xbf16>, vector<4x8x8xf32> -> vector<4x8x8xf32>
    "tpu.trace_stop"() : () -> ()
    %23 = arith.truncf %20 : vector<4x8x8xf32> to vector<4x8x8xbf16>
    %24 = arith.truncf %21 : vector<4x8x8xf32> to vector<4x8x8xbf16>
    "tpu.trace_start"() <{level = 10 : i32, message = "hqd,hkd->hqk"}> : () -> ()
    %cst_26 = arith.constant dense<0.000000e+00> : vector<4x8x8xf32>
    %25 = tpu.matmul %23, %24, %cst_26 {dimension_numbers = #tpu.dot_dimension_numbers<[2], [2], [1], [1], [0, 0, 0, 1, 1, 1], [0], [0]>} : vector<4x8x8xbf16>, vector<4x8x8xbf16>, vector<4x8x8xf32> -> vector<4x8x8xf32>
    "tpu.trace_stop"() : () -> ()
    %cst_27 = arith.constant 0.353553385 : f32
    %26 = vector.broadcast %cst_27 : f32 to vector<4x8x8xf32>
    %27 = arith.mulf %25, %26 : vector<4x8x8xf32>
    %28 = vector.shape_cast %5 : vector<8x8xf32> to vector<1x8x8xf32>
    %cst_28 = arith.constant 0.000000e+00 : f32
    %29 = vector.broadcast %cst_28 : f32 to vector<1x8x8xf32>
    %30 = arith.cmpf ogt, %28, %29 : vector<1x8x8xf32>
    %cst_29 = arith.constant -1.000000e+09 : f32
    %31 = vector.shape_cast %30 : vector<1x8x8xi1> to vector<1x8x8xi1>
    %32 = vector.broadcast %31 : vector<1x8x8xi1> to vector<4x8x8xi1>
    %33 = vector.broadcast %cst_29 : f32 to vector<4x8x8xf32>
    %34 = arith.select %32, %33, %27 : vector<4x8x8xi1>, vector<4x8x8xf32>
    %cst_30 = arith.constant dense<0xFF800000> : vector<4x8xf32>
    %35 = vector.multi_reduction <maximumf>, %34, %cst_30 [2] : vector<4x8x8xf32> to vector<4x8xf32>
    %36 = vector.shape_cast %35 : vector<4x8xf32> to vector<4x8x1xf32>
    %37 = vector.broadcast %36 : vector<4x8x1xf32> to vector<4x8x8xf32>
    %38 = arith.subf %34, %37 : vector<4x8x8xf32>
    %39 = math.exp %38 : vector<4x8x8xf32>
    %cst_31 = arith.constant dense<0.000000e+00> : vector<4x8xf32>
    %40 = vector.multi_reduction <add>, %39, %cst_31 [2] : vector<4x8x8xf32> to vector<4x8xf32>
    %41 = vector.shape_cast %40 : vector<4x8xf32> to vector<4x8x1xf32>
    %42 = tpu.reciprocal %41 {approx = true} : vector<4x8x1xf32> -> vector<4x8x1xf32>
    %43 = vector.broadcast %42 : vector<4x8x1xf32> to vector<4x8x8xf32>
    %44 = arith.mulf %39, %43 : vector<4x8x8xf32>
    %45 = arith.truncf %44 : vector<4x8x8xf32> to vector<4x8x8xbf16>
    %46 = arith.truncf %22 : vector<4x8x8xf32> to vector<4x8x8xbf16>
    "tpu.trace_start"() <{level = 10 : i32, message = "hqk,hkd->hqd"}> : () -> ()
    %cst_32 = arith.constant dense<0.000000e+00> : vector<4x8x8xf32>
    %47 = tpu.matmul %45, %46, %cst_32 {dimension_numbers = #tpu.dot_dimension_numbers<[2], [1], [1], [2], [0, 0, 0, 1, 1, 2], [0], [0]>} : vector<4x8x8xbf16>, vector<4x8x8xbf16>, vector<4x8x8xf32> -> vector<4x8x8xf32>
    "tpu.trace_stop"() : () -> ()
    %48 = arith.truncf %47 : vector<4x8x8xf32> to vector<4x8x8xbf16>
    "tpu.trace_start"() <{level = 10 : i32, message = "hqd,hdm->hqm"}> : () -> ()
    %cst_33 = arith.constant dense<0.000000e+00> : vector<4x8x32xf32>
    %49 = tpu.matmul %48, %9, %cst_33 {dimension_numbers = #tpu.dot_dimension_numbers<[2], [1], [1], [2], [0, 0, 0, 1, 1, 2], [0], [0]>} : vector<4x8x8xbf16>, vector<4x8x32xbf16>, vector<4x8x32xf32> -> vector<4x8x32xf32>
    "tpu.trace_stop"() : () -> ()
    %cst_34 = arith.constant dense<0.000000e+00> : vector<8x32xf32>
    %50 = vector.multi_reduction <add>, %49, %cst_34 [0] : vector<4x8x32xf32> to vector<8x32xf32>
    %51 = arith.addf %50, %1 : vector<8x32xf32>
    %cst_35 = arith.constant dense<0.000000e+00> : vector<8xf32>
    %52 = vector.multi_reduction <add>, %51, %cst_35 [1] : vector<8x32xf32> to vector<8xf32>
    %53 = vector.shape_cast %52 : vector<8xf32> to vector<8x1xf32>
    %cst_36 = arith.constant 3.200000e+01 : f32
    %54 = vector.broadcast %cst_36 : f32 to vector<8x1xf32>
    %55 = arith.divf %53, %54 : vector<8x1xf32>
    %56 = vector.broadcast %55 : vector<8x1xf32> to vector<8x32xf32>
    %57 = arith.subf %51, %56 : vector<8x32xf32>
    %58 = arith.mulf %57, %57 : vector<8x32xf32>
    %cst_37 = arith.constant dense<0.000000e+00> : vector<8xf32>
    %59 = vector.multi_reduction <add>, %58, %cst_37 [1] : vector<8x32xf32> to vector<8xf32>
    %60 = vector.shape_cast %59 : vector<8xf32> to vector<8x1xf32>
    %cst_38 = arith.constant 3.200000e+01 : f32
    %61 = vector.broadcast %cst_38 : f32 to vector<8x1xf32>
    %62 = arith.divf %60, %61 : vector<8x1xf32>
    %63 = vector.broadcast %55 : vector<8x1xf32> to vector<8x32xf32>
    %64 = arith.subf %51, %63 : vector<8x32xf32>
    %cst_39 = arith.constant 9.99999974E-6 : f32
    %65 = vector.broadcast %cst_39 : f32 to vector<8x1xf32>
    %66 = arith.addf %62, %65 : vector<8x1xf32>
    %67 = math.rsqrt %66 : vector<8x1xf32>
    %68 = vector.broadcast %67 : vector<8x1xf32> to vector<8x32xf32>
    %69 = arith.mulf %64, %68 : vector<8x32xf32>
    %70 = vector.broadcast %10 : vector<1x32xf32> to vector<8x32xf32>
    %71 = arith.mulf %69, %70 : vector<8x32xf32>
    %72 = vector.broadcast %11 : vector<1x32xf32> to vector<8x32xf32>
    %73 = arith.addf %71, %72 : vector<8x32xf32>
    %c0_40 = arith.constant 0 : index
    %c0_41 = arith.constant 0 : index
    %c0_42 = arith.constant 0 : index
    %c0_43 = arith.constant 0 : index
    %74 = vector.load %arg22[%c0_40, %c0_41, %c0_42, %c0_43] : memref<1x4x8x8xf32, #tpu.memory_space<vmem>>, vector<1x4x8x8xf32>
    %75 = vector.shape_cast %74 : vector<1x4x8x8xf32> to vector<4x8x8xf32>
    %76 = vector.shape_cast %44 : vector<4x8x8xf32> to vector<1x4x8x8xf32>
    tpu.vector_store %arg22[%c0_40, %c0_41, %c0_42, %c0_43], %76 {strides = array<i32>} : memref<1x4x8x8xf32, #tpu.memory_space<vmem>>, vector<1x4x8x8xf32>,
    %c0_44 = arith.constant 0 : index
    %c0_45 = arith.constant 0 : index
    %c0_46 = arith.constant 0 : index
    %77 = vector.load %arg4[%c0_44, %c0_45, %c0_46] : memref<1x8x8xf32, #tpu.memory_space<vmem>>, vector<1x8x8xf32>
    %78 = vector.shape_cast %77 : vector<1x8x8xf32> to vector<8x8xf32>
    %c0_47 = arith.constant 0 : index
    %c0_48 = arith.constant 0 : index
    %c0_49 = arith.constant 0 : index
    %79 = vector.load %arg11[%c0_47, %c0_48, %c0_49] : memref<4x32x8xbf16, #tpu.memory_space<vmem>>, vector<4x32x8xbf16>
    %c0_50 = arith.constant 0 : index
    %c0_51 = arith.constant 0 : index
    %c0_52 = arith.constant 0 : index
    %80 = vector.load %arg12[%c0_50, %c0_51, %c0_52] : memref<4x32x8xbf16, #tpu.memory_space<vmem>>, vector<4x32x8xbf16>
    %c0_53 = arith.constant 0 : index
    %c0_54 = arith.constant 0 : index
    %c0_55 = arith.constant 0 : index
    %81 = vector.load %arg13[%c0_53, %c0_54, %c0_55] : memref<4x32x8xbf16, #tpu.memory_space<vmem>>, vector<4x32x8xbf16>
    %c0_56 = arith.constant 0 : index
    %c0_57 = arith.constant 0 : index
    %c0_58 = arith.constant 0 : index
    %82 = vector.load %arg14[%c0_56, %c0_57, %c0_58] : memref<4x8x32xbf16, #tpu.memory_space<vmem>>, vector<4x8x32xbf16>
    %c0_59 = arith.constant 0 : index
    %c0_60 = arith.constant 0 : index
    %83 = vector.load %arg15[%c0_59, %c0_60] : memref<1x32xf32, #tpu.memory_space<vmem>>, vector<1x32xf32>
    %c0_61 = arith.constant 0 : index
    %c0_62 = arith.constant 0 : index
    %84 = vector.load %arg16[%c0_61, %c0_62] : memref<1x32xf32, #tpu.memory_space<vmem>>, vector<1x32xf32>
    %85 = arith.truncf %73 : vector<8x32xf32> to vector<8x32xbf16>
    %86 = vector.shape_cast %85 : vector<8x32xbf16> to vector<1x8x32xbf16>
    %87 = vector.shape_cast %86 : vector<1x8x32xbf16> to vector<1x8x32xbf16>
    %88 = vector.broadcast %87 : vector<1x8x32xbf16> to vector<4x8x32xbf16>
    %89 = arith.truncf %3 : vector<8x32xf32> to vector<8x32xbf16>
    %90 = vector.shape_cast %89 : vector<8x32xbf16> to vector<1x8x32xbf16>
    %91 = vector.shape_cast %90 : vector<1x8x32xbf16> to vector<1x8x32xbf16>
    %92 = vector.broadcast %91 : vector<1x8x32xbf16> to vector<4x8x32xbf16>
    "tpu.trace_start"() <{level = 10 : i32, message = "hld,hdk->hlk"}> : () -> ()
    %cst_63 = arith.constant dense<0.000000e+00> : vector<4x8x8xf32>
    %93 = tpu.matmul %88, %79, %cst_63 {dimension_numbers = #tpu.dot_dimension_numbers<[2], [1], [1], [2], [0, 0, 0, 1, 1, 2], [0], [0]>} : vector<4x8x32xbf16>, vector<4x32x8xbf16>, vector<4x8x8xf32> -> vector<4x8x8xf32>
    %cst_64 = arith.constant dense<0.000000e+00> : vector<4x8x8xf32>
    %94 = tpu.matmul %92, %80, %cst_64 {dimension_numbers = #tpu.dot_dimension_numbers<[2], [1], [1], [2], [0, 0, 0, 1, 1, 2], [0], [0]>} : vector<4x8x32xbf16>, vector<4x32x8xbf16>, vector<4x8x8xf32> -> vector<4x8x8xf32>
    %cst_65 = arith.constant dense<0.000000e+00> : vector<4x8x8xf32>
    %95 = tpu.matmul %92, %81, %cst_65 {dimension_numbers = #tpu.dot_dimension_numbers<[2], [1], [1], [2], [0, 0, 0, 1, 1, 2], [0], [0]>} : vector<4x8x32xbf16>, vector<4x32x8xbf16>, vector<4x8x8xf32> -> vector<4x8x8xf32>
    "tpu.trace_stop"() : () -> ()
    %96 = arith.truncf %93 : vector<4x8x8xf32> to vector<4x8x8xbf16>
    %97 = arith.truncf %94 : vector<4x8x8xf32> to vector<4x8x8xbf16>
    "tpu.trace_start"() <{level = 10 : i32, message = "hqd,hkd->hqk"}> : () -> ()
    %cst_66 = arith.constant dense<0.000000e+00> : vector<4x8x8xf32>
    %98 = tpu.matmul %96, %97, %cst_66 {dimension_numbers = #tpu.dot_dimension_numbers<[2], [2], [1], [1], [0, 0, 0, 1, 1, 1], [0], [0]>} : vector<4x8x8xbf16>, vector<4x8x8xbf16>, vector<4x8x8xf32> -> vector<4x8x8xf32>
    "tpu.trace_stop"() : () -> ()
    %cst_67 = arith.constant 0.353553385 : f32
    %99 = vector.broadcast %cst_67 : f32 to vector<4x8x8xf32>
    %100 = arith.mulf %98, %99 : vector<4x8x8xf32>
    %101 = vector.shape_cast %78 : vector<8x8xf32> to vector<1x8x8xf32>
    %cst_68 = arith.constant 0.000000e+00 : f32
    %102 = vector.broadcast %cst_68 : f32 to vector<1x8x8xf32>
    %103 = arith.cmpf ogt, %101, %102 : vector<1x8x8xf32>
    %cst_69 = arith.constant -1.000000e+09 : f32
    %104 = vector.shape_cast %103 : vector<1x8x8xi1> to vector<1x8x8xi1>
    %105 = vector.broadcast %104 : vector<1x8x8xi1> to vector<4x8x8xi1>
    %106 = vector.broadcast %cst_69 : f32 to vector<4x8x8xf32>
    %107 = arith.select %105, %106, %100 : vector<4x8x8xi1>, vector<4x8x8xf32>
    %cst_70 = arith.constant dense<0xFF800000> : vector<4x8xf32>
    %108 = vector.multi_reduction <maximumf>, %107, %cst_70 [2] : vector<4x8x8xf32> to vector<4x8xf32>
    %109 = vector.shape_cast %108 : vector<4x8xf32> to vector<4x8x1xf32>
    %110 = vector.broadcast %109 : vector<4x8x1xf32> to vector<4x8x8xf32>
    %111 = arith.subf %107, %110 : vector<4x8x8xf32>
    %112 = math.exp %111 : vector<4x8x8xf32>
    %cst_71 = arith.constant dense<0.000000e+00> : vector<4x8xf32>
    %113 = vector.multi_reduction <add>, %112, %cst_71 [2] : vector<4x8x8xf32> to vector<4x8xf32>
    %114 = vector.shape_cast %113 : vector<4x8xf32> to vector<4x8x1xf32>
    %115 = tpu.reciprocal %114 {approx = true} : vector<4x8x1xf32> -> vector<4x8x1xf32>
    %116 = vector.broadcast %115 : vector<4x8x1xf32> to vector<4x8x8xf32>
    %117 = arith.mulf %112, %116 : vector<4x8x8xf32>
    %118 = arith.truncf %117 : vector<4x8x8xf32> to vector<4x8x8xbf16>
    %119 = arith.truncf %95 : vector<4x8x8xf32> to vector<4x8x8xbf16>
    "tpu.trace_start"() <{level = 10 : i32, message = "hqk,hkd->hqd"}> : () -> ()
    %cst_72 = arith.constant dense<0.000000e+00> : vector<4x8x8xf32>
    %120 = tpu.matmul %118, %119, %cst_72 {dimension_numbers = #tpu.dot_dimension_numbers<[2], [1], [1], [2], [0, 0, 0, 1, 1, 2], [0], [0]>} : vector<4x8x8xbf16>, vector<4x8x8xbf16>, vector<4x8x8xf32> -> vector<4x8x8xf32>
    "tpu.trace_stop"() : () -> ()
    %121 = arith.truncf %120 : vector<4x8x8xf32> to vector<4x8x8xbf16>
    "tpu.trace_start"() <{level = 10 : i32, message = "hqd,hdm->hqm"}> : () -> ()
    %cst_73 = arith.constant dense<0.000000e+00> : vector<4x8x32xf32>
    %122 = tpu.matmul %121, %82, %cst_73 {dimension_numbers = #tpu.dot_dimension_numbers<[2], [1], [1], [2], [0, 0, 0, 1, 1, 2], [0], [0]>} : vector<4x8x8xbf16>, vector<4x8x32xbf16>, vector<4x8x32xf32> -> vector<4x8x32xf32>
    "tpu.trace_stop"() : () -> ()
    %cst_74 = arith.constant dense<0.000000e+00> : vector<8x32xf32>
    %123 = vector.multi_reduction <add>, %122, %cst_74 [0] : vector<4x8x32xf32> to vector<8x32xf32>
    %124 = arith.addf %123, %73 : vector<8x32xf32>
    %cst_75 = arith.constant dense<0.000000e+00> : vector<8xf32>
    %125 = vector.multi_reduction <add>, %124, %cst_75 [1] : vector<8x32xf32> to vector<8xf32>
    %126 = vector.shape_cast %125 : vector<8xf32> to vector<8x1xf32>
    %cst_76 = arith.constant 3.200000e+01 : f32
    %127 = vector.broadcast %cst_76 : f32 to vector<8x1xf32>
    %128 = arith.divf %126, %127 : vector<8x1xf32>
    %129 = vector.broadcast %128 : vector<8x1xf32> to vector<8x32xf32>
    %130 = arith.subf %124, %129 : vector<8x32xf32>
    %131 = arith.mulf %130, %130 : vector<8x32xf32>
    %cst_77 = arith.constant dense<0.000000e+00> : vector<8xf32>
    %132 = vector.multi_reduction <add>, %131, %cst_77 [1] : vector<8x32xf32> to vector<8xf32>
    %133 = vector.shape_cast %132 : vector<8xf32> to vector<8x1xf32>
    %cst_78 = arith.constant 3.200000e+01 : f32
    %134 = vector.broadcast %cst_78 : f32 to vector<8x1xf32>
    %135 = arith.divf %133, %134 : vector<8x1xf32>
    %136 = vector.broadcast %128 : vector<8x1xf32> to vector<8x32xf32>
    %137 = arith.subf %124, %136 : vector<8x32xf32>
    %cst_79 = arith.constant 9.99999974E-6 : f32
    %138 = vector.broadcast %cst_79 : f32 to vector<8x1xf32>
    %139 = arith.addf %135, %138 : vector<8x1xf32>
    %140 = math.rsqrt %139 : vector<8x1xf32>
    %141 = vector.broadcast %140 : vector<8x1xf32> to vector<8x32xf32>
    %142 = arith.mulf %137, %141 : vector<8x32xf32>
    %143 = vector.broadcast %83 : vector<1x32xf32> to vector<8x32xf32>
    %144 = arith.mulf %142, %143 : vector<8x32xf32>
    %145 = vector.broadcast %84 : vector<1x32xf32> to vector<8x32xf32>
    %146 = arith.addf %144, %145 : vector<8x32xf32>
    %c0_80 = arith.constant 0 : index
    %c0_81 = arith.constant 0 : index
    %c0_82 = arith.constant 0 : index
    %c0_83 = arith.constant 0 : index
    %147 = vector.load %arg23[%c0_80, %c0_81, %c0_82, %c0_83] : memref<1x4x8x8xf32, #tpu.memory_space<vmem>>, vector<1x4x8x8xf32>
    %148 = vector.shape_cast %147 : vector<1x4x8x8xf32> to vector<4x8x8xf32>
    %149 = vector.shape_cast %117 : vector<4x8x8xf32> to vector<1x4x8x8xf32>
    tpu.vector_store %arg23[%c0_80, %c0_81, %c0_82, %c0_83], %149 {strides = array<i32>} : memref<1x4x8x8xf32, #tpu.memory_space<vmem>>, vector<1x4x8x8xf32>,
    %150 = arith.truncf %146 : vector<8x32xf32> to vector<8x32xbf16>
    %c0_84 = arith.constant 0 : index
    %c0_85 = arith.constant 0 : index
    %151 = vector.load %arg17[%c0_84, %c0_85] : memref<32x64xbf16, #tpu.memory_space<vmem>>, vector<32x64xbf16>
    %cst_86 = arith.constant dense<0.000000e+00> : vector<8x64xf32>
    %152 = tpu.matmul %150, %151, %cst_86 {dimension_numbers = #tpu.dot_dimension_numbers<[1], [0], [0], [1], [0, 0, 1, 1], [], []>} : vector<8x32xbf16>, vector<32x64xbf16>, vector<8x64xf32> -> vector<8x64xf32>
    %cst_87 = arith.constant 0.000000e+00 : f32
    %153 = vector.broadcast %cst_87 : f32 to vector<8x64xf32>
    %154 = arith.maximumf %152, %153 : vector<8x64xf32>
    %155 = arith.truncf %154 : vector<8x64xf32> to vector<8x64xbf16>
    %c0_88 = arith.constant 0 : index
    %c0_89 = arith.constant 0 : index
    %156 = vector.load %arg18[%c0_88, %c0_89] : memref<64x32xbf16, #tpu.memory_space<vmem>>, vector<64x32xbf16>
    %cst_90 = arith.constant dense<0.000000e+00> : vector<8x32xf32>
    %157 = tpu.matmul %155, %156, %cst_90 {dimension_numbers = #tpu.dot_dimension_numbers<[1], [0], [0], [1], [0, 0, 1, 1], [], []>} : vector<8x64xbf16>, vector<64x32xbf16>, vector<8x32xf32> -> vector<8x32xf32>
    %158 = arith.addf %157, %146 : vector<8x32xf32>
    %c0_91 = arith.constant 0 : index
    %c0_92 = arith.constant 0 : index
    %159 = vector.load %arg19[%c0_91, %c0_92] : memref<1x32xf32, #tpu.memory_space<vmem>>, vector<1x32xf32>
    %c0_93 = arith.constant 0 : index
    %c0_94 = arith.constant 0 : index
    %160 = vector.load %arg20[%c0_93, %c0_94] : memref<1x32xf32, #tpu.memory_space<vmem>>, vector<1x32xf32>
    %cst_95 = arith.constant dense<0.000000e+00> : vector<8xf32>
    %161 = vector.multi_reduction <add>, %158, %cst_95 [1] : vector<8x32xf32> to vector<8xf32>
    %162 = vector.shape_cast %161 : vector<8xf32> to vector<8x1xf32>
    %cst_96 = arith.constant 3.200000e+01 : f32
    %163 = vector.broadcast %cst_96 : f32 to vector<8x1xf32>
    %164 = arith.divf %162, %163 : vector<8x1xf32>
    %165 = vector.broadcast %164 : vector<8x1xf32> to vector<8x32xf32>
    %166 = arith.subf %158, %165 : vector<8x32xf32>
    %167 = arith.mulf %166, %166 : vector<8x32xf32>
    %cst_97 = arith.constant dense<0.000000e+00> : vector<8xf32>
    %168 = vector.multi_reduction <add>, %167, %cst_97 [1] : vector<8x32xf32> to vector<8xf32>
    %169 = vector.shape_cast %168 : vector<8xf32> to vector<8x1xf32>
    %cst_98 = arith.constant 3.200000e+01 : f32
    %170 = vector.broadcast %cst_98 : f32 to vector<8x1xf32>
    %171 = arith.divf %169, %170 : vector<8x1xf32>
    %172 = vector.broadcast %164 : vector<8x1xf32> to vector<8x32xf32>
    %173 = arith.subf %158, %172 : vector<8x32xf32>
    %cst_99 = arith.constant 9.99999974E-6 : f32
    %174 = vector.broadcast %cst_99 : f32 to vector<8x1xf32>
    %175 = arith.addf %171, %174 : vector<8x1xf32>
    %176 = math.rsqrt %175 : vector<8x1xf32>
    %177 = vector.broadcast %176 : vector<8x1xf32> to vector<8x32xf32>
    %178 = arith.mulf %173, %177 : vector<8x32xf32>
    %179 = vector.broadcast %159 : vector<1x32xf32> to vector<8x32xf32>
    %180 = arith.mulf %178, %179 : vector<8x32xf32>
    %181 = vector.broadcast %160 : vector<1x32xf32> to vector<8x32xf32>
    %182 = arith.addf %180, %181 : vector<8x32xf32>
    %c0_100 = arith.constant 0 : index
    %c0_101 = arith.constant 0 : index
    %c0_102 = arith.constant 0 : index
    %183 = vector.load %arg21[%c0_100, %c0_101, %c0_102] : memref<1x8x32xf32, #tpu.memory_space<vmem>>, vector<1x8x32xf32>
    %184 = vector.shape_cast %183 : vector<1x8x32xf32> to vector<8x32xf32>
    %185 = vector.shape_cast %182 : vector<8x32xf32> to vector<1x8x32xf32>
    tpu.vector_store %arg21[%c0_100, %c0_101, %c0_102], %185 {strides = array<i32>} : memref<1x8x32xf32, #tpu.memory_space<vmem>>, vector<1x8x32xf32>,
    return
  }
  func.func @transform_0(%arg0: i32) -> (i32, i32, i32) {
    %c0_i32 = arith.constant 0 : i32
    %c0_i32_0 = arith.constant 0 : i32
    %c0_i32_1 = arith.constant 0 : i32
    return %arg0, %c0_i32, %c0_i32_0 : i32, i32, i32
  }
  func.func @transform_1(%arg0: i32) -> (i32, i32, i32) {
    %c0_i32 = arith.constant 0 : i32
    %c0_i32_0 = arith.constant 0 : i32
    %c0_i32_1 = arith.constant 0 : i32
    return %arg0, %c0_i32, %c0_i32_0 : i32, i32, i32
  }
  func.func @transform_2(%arg0: i32) -> (i32, i32, i32) {
    %c0_i32 = arith.constant 0 : i32
    %c0_i32_0 = arith.constant 0 : i32
    %c0_i32_1 = arith.constant 0 : i32
    return %arg0, %c0_i32, %c0_i32_0 : i32, i32, i32
  }
  func.func @transform_3(%arg0: i32) -> (i32, i32, i32) {
    %c0_i32 = arith.constant 0 : i32
    %c0_i32_0 = arith.constant 0 : i32
    %c0_i32_1 = arith.constant 0 : i32
    return %arg0, %c0_i32, %c0_i32_0 : i32, i32, i32
  }
  func.func @transform_4(%arg0: i32) -> (i32, i32, i32) {
    %c0_i32 = arith.constant 0 : i32
    %c0_i32_0 = arith.constant 0 : i32
    %c0_i32_1 = arith.constant 0 : i32
    %c0_i32_2 = arith.constant 0 : i32
    return %c0_i32, %c0_i32_0, %c0_i32_1 : i32, i32, i32
  }
  func.func @transform_5(%arg0: i32) -> (i32, i32, i32) {
    %c0_i32 = arith.constant 0 : i32
    %c0_i32_0 = arith.constant 0 : i32
    %c0_i32_1 = arith.constant 0 : i32
    %c0_i32_2 = arith.constant 0 : i32
    return %c0_i32, %c0_i32_0, %c0_i32_1 : i32, i32, i32
  }
  func.func @transform_6(%arg0: i32) -> (i32, i32, i32) {
    %c0_i32 = arith.constant 0 : i32
    %c0_i32_0 = arith.constant 0 : i32
    %c0_i32_1 = arith.constant 0 : i32
    %c0_i32_2 = arith.constant 0 : i32
    return %c0_i32, %c0_i32_0, %c0_i32_1 : i32, i32, i32
  }
  func.func @transform_7(%arg0: i32) -> (i32, i32, i32) {
    %c0_i32 = arith.constant 0 : i32
    %c0_i32_0 = arith.constant 0 : i32
    %c0_i32_1 = arith.constant 0 : i32
    %c0_i32_2 = arith.constant 0 : i32
    return %c0_i32, %c0_i32_0, %c0_i32_1 : i32, i32, i32
  }
  func.func @transform_8(%arg0: i32) -> (i32, i32) {
    %c0_i32 = arith.constant 0 : i32
    %c0_i32_0 = arith.constant 0 : i32
    %c0_i32_1 = arith.constant 0 : i32
    return %c0_i32, %c0_i32_0 : i32, i32
  }
  func.func @transform_9(%arg0: i32) -> (i32, i32) {
    %c0_i32 = arith.constant 0 : i32
    %c0_i32_0 = arith.constant 0 : i32
    %c0_i32_1 = arith.constant 0 : i32
    return %c0_i32, %c0_i32_0 : i32, i32
  }
  func.func @transform_10(%arg0: i32) -> (i32, i32, i32) {
    %c0_i32 = arith.constant 0 : i32
    %c0_i32_0 = arith.constant 0 : i32
    %c0_i32_1 = arith.constant 0 : i32
    %c0_i32_2 = arith.constant 0 : i32
    return %c0_i32, %c0_i32_0, %c0_i32_1 : i32, i32, i32
  }
  func.func @transform_11(%arg0: i32) -> (i32, i32, i32) {
    %c0_i32 = arith.constant 0 : i32
    %c0_i32_0 = arith.constant 0 : i32
    %c0_i32_1 = arith.constant 0 : i32
    %c0_i32_2 = arith.constant 0 : i32
    return %c0_i32, %c0_i32_0, %c0_i32_1 : i32, i32, i32
  }
  func.func @transform_12(%arg0: i32) -> (i32, i32, i32) {
    %c0_i32 = arith.constant 0 : i32
    %c0_i32_0 = arith.constant 0 : i32
    %c0_i32_1 = arith.constant 0 : i32
    %c0_i32_2 = arith.constant 0 : i32
    return %c0_i32, %c0_i32_0, %c0_i32_1 : i32, i32, i32
  }
  func.func @transform_13(%arg0: i32) -> (i32, i32, i32) {
    %c0_i32 = arith.constant 0 : i32
    %c0_i32_0 = arith.constant 0 : i32
    %c0_i32_1 = arith.constant 0 : i32
    %c0_i32_2 = arith.constant 0 : i32
    return %c0_i32, %c0_i32_0, %c0_i32_1 : i32, i32, i32
  }
  func.func @transform_14(%arg0: i32) -> (i32, i32) {
    %c0_i32 = arith.constant 0 : i32
    %c0_i32_0 = arith.constant 0 : i32
    %c0_i32_1 = arith.constant 0 : i32
    return %c0_i32, %c0_i32_0 : i32, i32
  }
  func.func @transform_15(%arg0: i32) -> (i32, i32) {
    %c0_i32 = arith.constant 0 : i32
    %c0_i32_0 = arith.constant 0 : i32
    %c0_i32_1 = arith.constant 0 : i32
    return %c0_i32, %c0_i32_0 : i32, i32
  }
  func.func @transform_16(%arg0: i32) -> (i32, i32) {
    %c0_i32 = arith.constant 0 : i32
    %c0_i32_0 = arith.constant 0 : i32
    %c0_i32_1 = arith.constant 0 : i32
    return %c0_i32, %c0_i32_0 : i32, i32
  }
  func.func @transform_17(%arg0: i32) -> (i32, i32) {
    %c0_i32 = arith.constant 0 : i32
    %c0_i32_0 = arith.constant 0 : i32
    %c0_i32_1 = arith.constant 0 : i32
    return %c0_i32, %c0_i32_0 : i32, i32
  }
  func.func @transform_18(%arg0: i32) -> (i32, i32) {
    %c0_i32 = arith.constant 0 : i32
    %c0_i32_0 = arith.constant 0 : i32
    %c0_i32_1 = arith.constant 0 : i32
    return %c0_i32, %c0_i32_0 : i32, i32
  }
  func.func @transform_19(%arg0: i32) -> (i32, i32) {
    %c0_i32 = arith.constant 0 : i32
    %c0_i32_0 = arith.constant 0 : i32
    %c0_i32_1 = arith.constant 0 : i32
    return %c0_i32, %c0_i32_0 : i32, i32
  }
  func.func @transform_20(%arg0: i32) -> (i32, i32, i32) {
    %c0_i32 = arith.constant 0 : i32
    %c0_i32_0 = arith.constant 0 : i32
    %c0_i32_1 = arith.constant 0 : i32
    return %arg0, %c0_i32, %c0_i32_0 : i32, i32, i32
  }
  func.func @transform_21(%arg0: i32) -> (i32, i32, i32, i32) {
    %c0_i32 = arith.constant 0 : i32
    %c0_i32_0 = arith.constant 0 : i32
    %c0_i32_1 = arith.constant 0 : i32
    %c0_i32_2 = arith.constant 0 : i32
    return %arg0, %c0_i32, %c0_i32_0, %c0_i32_1 : i32, i32, i32, i32
  }
  func.func @transform_22(%arg0: i32) -> (i32, i32, i32, i32) {
    %c0_i32 = arith.constant 0 : i32
    %c0_i32_0 = arith.constant 0 : i32
    %c0_i32_1 = arith.constant 0 : i32
    %c0_i32_2 = arith.constant 0 : i32
    return %arg0, %c0_i32, %c0_i32_0, %c0_i32_1 : i32, i32, i32, i32
  }
}

</mosaic_0001>

<llo_original>
// kernel: decoder_layer.1
$region0: #{decoder_layer.1}
  #allocation0 [shape = 'u32[]', space=smem, size = 0x4, offset = 0x4, fixed_abs, tag = 'smem constant byte address 0x4 - core index']
  #allocation1 [shape = 'u32[72,128]{1,0:T(1,128)}', space=vmem, size = 0x9000, scoped, tag = 'internal scratch']
  %s0 = inlined_call_operand.vmem [shape: f32[2,8,32], index: 0, kind: input, shape index: {}]
  %s1 = inlined_call_operand.vmem [shape: f32[2,8,32], index: 1, kind: input, shape index: {}]
  %s2 = inlined_call_operand.vmem [shape: f32[2,8,8], index: 2, kind: input, shape index: {}]
  %s3 = inlined_call_operand.vmem [shape: f32[2,8,8], index: 3, kind: input, shape index: {}]
  %s4 = inlined_call_operand.vmem [shape: bf16[4,32,8], index: 4, kind: input, shape index: {}]
  %s5 = inlined_call_operand.vmem [shape: bf16[4,32,8], index: 5, kind: input, shape index: {}]
  %s6 = inlined_call_operand.vmem [shape: bf16[4,32,8], index: 6, kind: input, shape index: {}]
  %s7 = inlined_call_operand.vmem [shape: bf16[4,8,32], index: 7, kind: input, shape index: {}]
  %s8 = inlined_call_operand.vmem [shape: f32[1,32], index: 8, kind: input, shape index: {}]
  %s9 = inlined_call_operand.vmem [shape: f32[1,32], index: 9, kind: input, shape index: {}]
  %s10 = inlined_call_operand.vmem [shape: bf16[4,32,8], index: 10, kind: input, shape index: {}]
  %s11 = inlined_call_operand.vmem [shape: bf16[4,32,8], index: 11, kind: input, shape index: {}]
  %s12 = inlined_call_operand.vmem [shape: bf16[4,32,8], index: 12, kind: input, shape index: {}]
  %s13 = inlined_call_operand.vmem [shape: bf16[4,8,32], index: 13, kind: input, shape index: {}]
  %s14 = inlined_call_operand.vmem [shape: f32[1,32], index: 14, kind: input, shape index: {}]
  %s15 = inlined_call_operand.vmem [shape: f32[1,32], index: 15, kind: input, shape index: {}]
  %s16 = inlined_call_operand.vmem [shape: bf16[32,64], index: 16, kind: input, shape index: {}]
  %s17 = inlined_call_operand.vmem [shape: bf16[64,32], index: 17, kind: input, shape index: {}]
  %s18 = inlined_call_operand.vmem [shape: f32[1,32], index: 18, kind: input, shape index: {}]
  %s19 = inlined_call_operand.vmem [shape: f32[1,32], index: 19, kind: input, shape index: {}]
  %s20 = inlined_call_operand.hbm [shape: f32[2,8,32], index: 20, kind: output, shape index: {0}]
  %s21 = inlined_call_operand.hbm [shape: f32[2,4,8,8], index: 21, kind: output, shape index: {1}]
  %s22 = inlined_call_operand.hbm [shape: f32[2,4,8,8], index: 22, kind: output, shape index: {2}]
  %23 = xla_tuple %s20, %s21, %s22
  %s24 = sld [smem:[#allocation0]]
  $region129: #{decoder_layer.1} parent=0
    _
  %s26 = ssub.s32 1, %s24
  %s27 = scalar_select 0, %s26, %s24
  $region1: #{decoder_layer.1} parent=0
    #allocation2 [shape = 'u8[8192]{0}', space=vmem, size = 0x2000, scoped, tag = 'output window, operand 0']
    #allocation3 [shape = 's32[2]{0}', space=sflag, size = 0x8, scoped, tag = 'scoped memory for decoder_layer.1']
    #allocation4 [shape = 'u8[32768]{0}', space=vmem, size = 0x8000, scoped, tag = 'output window, operand 1']
    #allocation5 [shape = 's32[2]{0}', space=sflag, size = 0x8, scoped, tag = 'scoped memory for decoder_layer.1']
    #allocation6 [shape = 'u8[32768]{0}', space=vmem, size = 0x8000, scoped, tag = 'output window, operand 2']
    %28 = vsyncpa [#allocation3], 0
    %s29 = scalar_lea.sflag [#allocation3], 1
    %30 = vsyncpa %s29, 0
    %31 = vsyncpa [#allocation5], 0
    %s32 = scalar_lea.sflag [#allocation5], 1
    %33 = vsyncpa %s32, 0
    loop: start=0, step=1, limit=4
    $region2: #{decoder_layer.1} parent=1 // loop_pre_header
      _
    $region3: #{decoder_layer.1} parent=1 // loop_header
      %s35 = sphi 0, %s39
      %p36 = scmp.ge.s32.totalorder %s35, 4
      %s45 = sphi 0, %s47
      %s48 = sphi 0, %s45
      %s49 = sphi 0, %s48
      %s65 = sphi 0, %s49
      %s71 = sphi 0, %s73
      %s74 = sphi 0, %s71
      %s75 = sphi 0, %s74
      %s91 = sphi 0, %s75
      %s97 = sphi 0, %s99
      %s100 = sphi 0, %s97
      %s101 = sphi 0, %s100
      %s117 = sphi 0, %s101
      %s123 = sphi 0, %s125
      %s126 = sphi 0, %s123
      %s127 = sphi 0, %s126
      %s143 = sphi 0, %s127
      %s147 = sphi 0, %s147
      %s149 = sphi 0, %s147
      %s150 = sphi 0, %s149
      %s164 = sphi 0, %s150
      %s168 = sphi 0, %s168
      %s170 = sphi 0, %s168
      %s171 = sphi 0, %s170
      %s185 = sphi 0, %s171
      %s189 = sphi 0, %s189
      %s191 = sphi 0, %s189
      %s192 = sphi 0, %s191
      %s206 = sphi 0, %s192
      %s210 = sphi 0, %s210
      %s212 = sphi 0, %s210
      %s213 = sphi 0, %s212
      %s227 = sphi 0, %s213
      %s231 = sphi 0, %s231
      %s233 = sphi 0, %s231
      %s234 = sphi 0, %s233
      %s248 = sphi 0, %s234
      %s252 = sphi 0, %s252
      %s254 = sphi 0, %s252
      %s255 = sphi 0, %s254
      %s269 = sphi 0, %s255
      %s273 = sphi 0, %s273
      %s275 = sphi 0, %s273
      %s276 = sphi 0, %s275
      %s290 = sphi 0, %s276
      %s294 = sphi 0, %s294
      %s296 = sphi 0, %s294
      %s297 = sphi 0, %s296
      %s311 = sphi 0, %s297
      %s315 = sphi 0, %s315
      %s317 = sphi 0, %s315
      %s318 = sphi 0, %s317
      %s332 = sphi 0, %s318
      %s336 = sphi 0, %s336
      %s338 = sphi 0, %s336
      %s339 = sphi 0, %s338
      %s353 = sphi 0, %s339
      %s357 = sphi 0, %s357
      %s359 = sphi 0, %s357
      %s360 = sphi 0, %s359
      %s374 = sphi 0, %s360
      %s378 = sphi 0, %s378
      %s380 = sphi 0, %s378
      %s381 = sphi 0, %s380
      %s395 = sphi 0, %s381
      %s399 = sphi 0, %s399
      %s401 = sphi 0, %s399
      %s402 = sphi 0, %s401
      %s416 = sphi 0, %s402
      %s420 = sphi 0, %s420
      %s422 = sphi 0, %s420
      %s423 = sphi 0, %s422
      %s437 = sphi 0, %s423
      %s441 = sphi 0, %s441
      %s443 = sphi 0, %s441
      %s444 = sphi 0, %s443
      %s458 = sphi 0, %s444
      %s462 = sphi 0, %s462
      %s464 = sphi 0, %s462
      %s465 = sphi 0, %s464
      %s479 = sphi 0, %s465
      %s485 = sphi 0, %s487
      %s488 = sphi 0, %s485
      %s489 = sphi 0, %s488
      %s505 = sphi 0, %s489
      %s511 = sphi 0, %s513
      %s514 = sphi 0, %s511
      %s515 = sphi 0, %s514
      %s531 = sphi 0, %s515
      %s537 = sphi 0, %s539
      %s540 = sphi 0, %s537
      %s541 = sphi 0, %s540
      %s557 = sphi 0, %s541
    $region4: #{decoder_layer.1} parent=1 // loop_header_branch
      %38 = sbr.rel (%p36) target = $region8
    $region5: #{decoder_layer.1} parent=1 // loop_body
      %s40 = ssub.s32 %s35, 1
      %s41 = ssub.s32 %s35, 2
      %s42 = sadd.s32 %s35, 1
      %s43 = ssub.s32 %s35, %s42
      %p44 = scmp.eq.s32.totalorder %s43, 0
      %s46 = sadd.s32 %s45, 1
      %s47 = scalar_select %p44, %s45, %s46
      %p50 = pneg %p44
      %p51 = scmp.eq.s32.totalorder %s35, 1
      %p52 = por %p50, %p51
      %p53 = scmp.ne.s32.totalorder %s45, %s48
      %p54 = scmp.eq.s32.totalorder %s35, 0
      %p55 = por %p53, %p54
      %p56 = scmp.ne.s32.totalorder %s45, %s48
      %p57 = scmp.eq.s32.totalorder %s40, 1
      %p58 = por %p56, %p57
      %p59 = scmp.ne.s32.totalorder %s48, %s49
      %p60 = scmp.eq.s32.totalorder %s40, 0
      %p61 = por %p59, %p60
      %p62 = scmp.ne.s32.totalorder %s48, %s49
      %p63 = scmp.eq.s32.totalorder %s41, 1
      %p64 = por %p62, %p63
      %p66 = scmp.ne.s32.totalorder %s49, %s65
      %p67 = scmp.eq.s32.totalorder %s41, 0
      %p68 = por %p66, %p67
      %s69 = ssub.s32 %s35, %s42
      %p70 = scmp.eq.s32.totalorder %s69, 0
      %s72 = sadd.s32 %s71, 1
      %s73 = scalar_select %p70, %s71, %s72
      %p76 = pneg %p70
      %p77 = scmp.eq.s32.totalorder %s35, 1
      %p78 = por %p76, %p77
      %p79 = scmp.ne.s32.totalorder %s71, %s74
      %p80 = scmp.eq.s32.totalorder %s35, 0
      %p81 = por %p79, %p80
      %p82 = scmp.ne.s32.totalorder %s71, %s74
      %p83 = scmp.eq.s32.totalorder %s40, 1
      %p84 = por %p82, %p83
      %p85 = scmp.ne.s32.totalorder %s74, %s75
      %p86 = scmp.eq.s32.totalorder %s40, 0
      %p87 = por %p85, %p86
      %p88 = scmp.ne.s32.totalorder %s74, %s75
      %p89 = scmp.eq.s32.totalorder %s41, 1
      %p90 = por %p88, %p89
      %p92 = scmp.ne.s32.totalorder %s75, %s91
      %p93 = scmp.eq.s32.totalorder %s41, 0
      %p94 = por %p92, %p93
      %s95 = ssub.s32 %s35, %s42
      %p96 = scmp.eq.s32.totalorder %s95, 0
      %s98 = sadd.s32 %s97, 1
      %s99 = scalar_select %p96, %s97, %s98
      %p102 = pneg %p96
      %p103 = scmp.eq.s32.totalorder %s35, 1
      %p104 = por %p102, %p103
      %p105 = scmp.ne.s32.totalorder %s97, %s100
      %p106 = scmp.eq.s32.totalorder %s35, 0
      %p107 = por %p105, %p106
      %p108 = scmp.ne.s32.totalorder %s97, %s100
      %p109 = scmp.eq.s32.totalorder %s40, 1
      %p110 = por %p108, %p109
      %p111 = scmp.ne.s32.totalorder %s100, %s101
      %p112 = scmp.eq.s32.totalorder %s40, 0
      %p113 = por %p111, %p112
      %p114 = scmp.ne.s32.totalorder %s100, %s101
      %p115 = scmp.eq.s32.totalorder %s41, 1
      %p116 = por %p114, %p115
      %p118 = scmp.ne.s32.totalorder %s101, %s117
      %p119 = scmp.eq.s32.totalorder %s41, 0
      %p120 = por %p118, %p119
      %s121 = ssub.s32 %s35, %s42
      %p122 = scmp.eq.s32.totalorder %s121, 0
      %s124 = sadd.s32 %s123, 1
      %s125 = scalar_select %p122, %s123, %s124
      %p128 = pneg %p122
      %p129 = scmp.eq.s32.totalorder %s35, 1
      %p130 = por %p128, %p129
      %p131 = scmp.ne.s32.totalorder %s123, %s126
      %p132 = scmp.eq.s32.totalorder %s35, 0
      %p133 = por %p131, %p132
      %p134 = scmp.ne.s32.totalorder %s123, %s126
      %p135 = scmp.eq.s32.totalorder %s40, 1
      %p136 = por %p134, %p135
      %p137 = scmp.ne.s32.totalorder %s126, %s127
      %p138 = scmp.eq.s32.totalorder %s40, 0
      %p139 = por %p137, %p138
      %p140 = scmp.ne.s32.totalorder %s126, %s127
      %p141 = scmp.eq.s32.totalorder %s41, 1
      %p142 = por %p140, %p141
      %p144 = scmp.ne.s32.totalorder %s127, %s143
      %p145 = scmp.eq.s32.totalorder %s41, 0
      %p146 = por %p144, %p145
      %s148 = sadd.s32 %s147, 1
      %p151 = scmp.eq.s32.totalorder %s35, 1
      %p152 = scmp.ne.s32.totalorder %s147, %s149
      %p153 = scmp.eq.s32.totalorder %s35, 0
      %p154 = por %p152, %p153
      %p155 = scmp.ne.s32.totalorder %s147, %s149
      %p156 = scmp.eq.s32.totalorder %s40, 1
      %p157 = por %p155, %p156
      %p158 = scmp.ne.s32.totalorder %s149, %s150
      %p159 = scmp.eq.s32.totalorder %s40, 0
      %p160 = por %p158, %p159
      %p161 = scmp.ne.s32.totalorder %s149, %s150
      %p162 = scmp.eq.s32.totalorder %s41, 1
      %p163 = por %p161, %p162
      %p165 = scmp.ne.s32.totalorder %s150, %s164
      %p166 = scmp.eq.s32.totalorder %s41, 0
      %p167 = por %p165, %p166
      %s169 = sadd.s32 %s168, 1
      %p172 = scmp.eq.s32.totalorder %s35, 1
      %p173 = scmp.ne.s32.totalorder %s168, %s170
      %p174 = scmp.eq.s32.totalorder %s35, 0
      %p175 = por %p173, %p174
      %p176 = scmp.ne.s32.totalorder %s168, %s170
      %p177 = scmp.eq.s32.totalorder %s40, 1
      %p178 = por %p176, %p177
      %p179 = scmp.ne.s32.totalorder %s170, %s171
      %p180 = scmp.eq.s32.totalorder %s40, 0
      %p181 = por %p179, %p180
      %p182 = scmp.ne.s32.totalorder %s170, %s171
      %p183 = scmp.eq.s32.totalorder %s41, 1
      %p184 = por %p182, %p183
      %p186 = scmp.ne.s32.totalorder %s171, %s185
      %p187 = scmp.eq.s32.totalorder %s41, 0
      %p188 = por %p186, %p187
      %s190 = sadd.s32 %s189, 1
      %p193 = scmp.eq.s32.totalorder %s35, 1
      %p194 = scmp.ne.s32.totalorder %s189, %s191
      %p195 = scmp.eq.s32.totalorder %s35, 0
      %p196 = por %p194, %p195
      %p197 = scmp.ne.s32.totalorder %s189, %s191
      %p198 = scmp.eq.s32.totalorder %s40, 1
      %p199 = por %p197, %p198
      %p200 = scmp.ne.s32.totalorder %s191, %s192
      %p201 = scmp.eq.s32.totalorder %s40, 0
      %p202 = por %p200, %p201
      %p203 = scmp.ne.s32.totalorder %s191, %s192
      %p204 = scmp.eq.s32.totalorder %s41, 1
      %p205 = por %p203, %p204
      %p207 = scmp.ne.s32.totalorder %s192, %s206
      %p208 = scmp.eq.s32.totalorder %s41, 0
      %p209 = por %p207, %p208
      %s211 = sadd.s32 %s210, 1
      %p214 = scmp.eq.s32.totalorder %s35, 1
      %p215 = scmp.ne.s32.totalorder %s210, %s212
      %p216 = scmp.eq.s32.totalorder %s35, 0
      %p217 = por %p215, %p216
      %p218 = scmp.ne.s32.totalorder %s210, %s212
      %p219 = scmp.eq.s32.totalorder %s40, 1
      %p220 = por %p218, %p219
      %p221 = scmp.ne.s32.totalorder %s212, %s213
      %p222 = scmp.eq.s32.totalorder %s40, 0
      %p223 = por %p221, %p222
      %p224 = scmp.ne.s32.totalorder %s212, %s213
      %p225 = scmp.eq.s32.totalorder %s41, 1
      %p226 = por %p224, %p225
      %p228 = scmp.ne.s32.totalorder %s213, %s227
      %p229 = scmp.eq.s32.totalorder %s41, 0
      %p230 = por %p228, %p229
      %s232 = sadd.s32 %s231, 1
      %p235 = scmp.eq.s32.totalorder %s35, 1
      %p236 = scmp.ne.s32.totalorder %s231, %s233
      %p237 = scmp.eq.s32.totalorder %s35, 0
      %p238 = por %p236, %p237
      %p239 = scmp.ne.s32.totalorder %s231, %s233
      %p240 = scmp.eq.s32.totalorder %s40, 1
      %p241 = por %p239, %p240
      %p242 = scmp.ne.s32.totalorder %s233, %s234
      %p243 = scmp.eq.s32.totalorder %s40, 0
      %p244 = por %p242, %p243
      %p245 = scmp.ne.s32.totalorder %s233, %s234
      %p246 = scmp.eq.s32.totalorder %s41, 1
      %p247 = por %p245, %p246
      %p249 = scmp.ne.s32.totalorder %s234, %s248
      %p250 = scmp.eq.s32.totalorder %s41, 0
      %p251 = por %p249, %p250
      %s253 = sadd.s32 %s252, 1
      %p256 = scmp.eq.s32.totalorder %s35, 1
      %p257 = scmp.ne.s32.totalorder %s252, %s254
      %p258 = scmp.eq.s32.totalorder %s35, 0
      %p259 = por %p257, %p258
      %p260 = scmp.ne.s32.totalorder %s252, %s254
      %p261 = scmp.eq.s32.totalorder %s40, 1
      %p262 = por %p260, %p261
      %p263 = scmp.ne.s32.totalorder %s254, %s255
      %p264 = scmp.eq.s32.totalorder %s40, 0
      %p265 = por %p263, %p264
      %p266 = scmp.ne.s32.totalorder %s254, %s255
      %p267 = scmp.eq.s32.totalorder %s41, 1
      %p268 = por %p266, %p267
      %p270 = scmp.ne.s32.totalorder %s255, %s269
      %p271 = scmp.eq.s32.totalorder %s41, 0
      %p272 = por %p270, %p271
      %s274 = sadd.s32 %s273, 1
      %p277 = scmp.eq.s32.totalorder %s35, 1
      %p278 = scmp.ne.s32.totalorder %s273, %s275
      %p279 = scmp.eq.s32.totalorder %s35, 0
      %p280 = por %p278, %p279
      %p281 = scmp.ne.s32.totalorder %s273, %s275
      %p282 = scmp.eq.s32.totalorder %s40, 1
      %p283 = por %p281, %p282
      %p284 = scmp.ne.s32.totalorder %s275, %s276
      %p285 = scmp.eq.s32.totalorder %s40, 0
      %p286 = por %p284, %p285
      %p287 = scmp.ne.s32.totalorder %s275, %s276
      %p288 = scmp.eq.s32.totalorder %s41, 1
      %p289 = por %p287, %p288
      %p291 = scmp.ne.s32.totalorder %s276, %s290
      %p292 = scmp.eq.s32.totalorder %s41, 0
      %p293 = por %p291, %p292
      %s295 = sadd.s32 %s294, 1
      %p298 = scmp.eq.s32.totalorder %s35, 1
      %p299 = scmp.ne.s32.totalorder %s294, %s296
      %p300 = scmp.eq.s32.totalorder %s35, 0
      %p301 = por %p299, %p300
      %p302 = scmp.ne.s32.totalorder %s294, %s296
      %p303 = scmp.eq.s32.totalorder %s40, 1
      %p304 = por %p302, %p303
      %p305 = scmp.ne.s32.totalorder %s296, %s297
      %p306 = scmp.eq.s32.totalorder %s40, 0
      %p307 = por %p305, %p306
      %p308 = scmp.ne.s32.totalorder %s296, %s297
      %p309 = scmp.eq.s32.totalorder %s41, 1
      %p310 = por %p308, %p309
      %p312 = scmp.ne.s32.totalorder %s297, %s311
      %p313 = scmp.eq.s32.totalorder %s41, 0
      %p314 = por %p312, %p313
      %s316 = sadd.s32 %s315, 1
      %p319 = scmp.eq.s32.totalorder %s35, 1
      %p320 = scmp.ne.s32.totalorder %s315, %s317
      %p321 = scmp.eq.s32.totalorder %s35, 0
      %p322 = por %p320, %p321
      %p323 = scmp.ne.s32.totalorder %s315, %s317
      %p324 = scmp.eq.s32.totalorder %s40, 1
      %p325 = por %p323, %p324
      %p326 = scmp.ne.s32.totalorder %s317, %s318
      %p327 = scmp.eq.s32.totalorder %s40, 0
      %p328 = por %p326, %p327
      %p329 = scmp.ne.s32.totalorder %s317, %s318
      %p330 = scmp.eq.s32.totalorder %s41, 1
      %p331 = por %p329, %p330
      %p333 = scmp.ne.s32.totalorder %s318, %s332
      %p334 = scmp.eq.s32.totalorder %s41, 0
      %p335 = por %p333, %p334
      %s337 = sadd.s32 %s336, 1
      %p340 = scmp.eq.s32.totalorder %s35, 1
      %p341 = scmp.ne.s32.totalorder %s336, %s338
      %p342 = scmp.eq.s32.totalorder %s35, 0
      %p343 = por %p341, %p342
      %p344 = scmp.ne.s32.totalorder %s336, %s338
      %p345 = scmp.eq.s32.totalorder %s40, 1
      %p346 = por %p344, %p345
      %p347 = scmp.ne.s32.totalorder %s338, %s339
      %p348 = scmp.eq.s32.totalorder %s40, 0
      %p349 = por %p347, %p348
      %p350 = scmp.ne.s32.totalorder %s338, %s339
      %p351 = scmp.eq.s32.totalorder %s41, 1
      %p352 = por %p350, %p351
      %p354 = scmp.ne.s32.totalorder %s339, %s353
      %p355 = scmp.eq.s32.totalorder %s41, 0
      %p356 = por %p354, %p355
      %s358 = sadd.s32 %s357, 1
      %p361 = scmp.eq.s32.totalorder %s35, 1
      %p362 = scmp.ne.s32.totalorder %s357, %s359
      %p363 = scmp.eq.s32.totalorder %s35, 0
      %p364 = por %p362, %p363
      %p365 = scmp.ne.s32.totalorder %s357, %s359
      %p366 = scmp.eq.s32.totalorder %s40, 1
      %p367 = por %p365, %p366
      %p368 = scmp.ne.s32.totalorder %s359, %s360
      %p369 = scmp.eq.s32.totalorder %s40, 0
      %p370 = por %p368, %p369
      %p371 = scmp.ne.s32.totalorder %s359, %s360
      %p372 = scmp.eq.s32.totalorder %s41, 1
      %p373 = por %p371, %p372
      %p375 = scmp.ne.s32.totalorder %s360, %s374
      %p376 = scmp.eq.s32.totalorder %s41, 0
      %p377 = por %p375, %p376
      %s379 = sadd.s32 %s378, 1
      %p382 = scmp.eq.s32.totalorder %s35, 1
      %p383 = scmp.ne.s32.totalorder %s378, %s380
      %p384 = scmp.eq.s32.totalorder %s35, 0
      %p385 = por %p383, %p384
      %p386 = scmp.ne.s32.totalorder %s378, %s380
      %p387 = scmp.eq.s32.totalorder %s40, 1
      %p388 = por %p386, %p387
      %p389 = scmp.ne.s32.totalorder %s380, %s381
      %p390 = scmp.eq.s32.totalorder %s40, 0
      %p391 = por %p389, %p390
      %p392 = scmp.ne.s32.totalorder %s380, %s381
      %p393 = scmp.eq.s32.totalorder %s41, 1
      %p394 = por %p392, %p393
      %p396 = scmp.ne.s32.totalorder %s381, %s395
      %p397 = scmp.eq.s32.totalorder %s41, 0
      %p398 = por %p396, %p397
      %s400 = sadd.s32 %s399, 1
      %p403 = scmp.eq.s32.totalorder %s35, 1
      %p404 = scmp.ne.s32.totalorder %s399, %s401
      %p405 = scmp.eq.s32.totalorder %s35, 0
      %p406 = por %p404, %p405
      %p407 = scmp.ne.s32.totalorder %s399, %s401
      %p408 = scmp.eq.s32.totalorder %s40, 1
      %p409 = por %p407, %p408
      %p410 = scmp.ne.s32.totalorder %s401, %s402
      %p411 = scmp.eq.s32.totalorder %s40, 0
      %p412 = por %p410, %p411
      %p413 = scmp.ne.s32.totalorder %s401, %s402
      %p414 = scmp.eq.s32.totalorder %s41, 1
      %p415 = por %p413, %p414
      %p417 = scmp.ne.s32.totalorder %s402, %s416
      %p418 = scmp.eq.s32.totalorder %s41, 0
      %p419 = por %p417, %p418
      %s421 = sadd.s32 %s420, 1
      %p424 = scmp.eq.s32.totalorder %s35, 1
      %p425 = scmp.ne.s32.totalorder %s420, %s422
      %p426 = scmp.eq.s32.totalorder %s35, 0
      %p427 = por %p425, %p426
      %p428 = scmp.ne.s32.totalorder %s420, %s422
      %p429 = scmp.eq.s32.totalorder %s40, 1
      %p430 = por %p428, %p429
      %p431 = scmp.ne.s32.totalorder %s422, %s423
      %p432 = scmp.eq.s32.totalorder %s40, 0
      %p433 = por %p431, %p432
      %p434 = scmp.ne.s32.totalorder %s422, %s423
      %p435 = scmp.eq.s32.totalorder %s41, 1
      %p436 = por %p434, %p435
      %p438 = scmp.ne.s32.totalorder %s423, %s437
      %p439 = scmp.eq.s32.totalorder %s41, 0
      %p440 = por %p438, %p439
      %s442 = sadd.s32 %s441, 1
      %p445 = scmp.eq.s32.totalorder %s35, 1
      %p446 = scmp.ne.s32.totalorder %s441, %s443
      %p447 = scmp.eq.s32.totalorder %s35, 0
      %p448 = por %p446, %p447
      %p449 = scmp.ne.s32.totalorder %s441, %s443
      %p450 = scmp.eq.s32.totalorder %s40, 1
      %p451 = por %p449, %p450
      %p452 = scmp.ne.s32.totalorder %s443, %s444
      %p453 = scmp.eq.s32.totalorder %s40, 0
      %p454 = por %p452, %p453
      %p455 = scmp.ne.s32.totalorder %s443, %s444
      %p456 = scmp.eq.s32.totalorder %s41, 1
      %p457 = por %p455, %p456
      %p459 = scmp.ne.s32.totalorder %s444, %s458
      %p460 = scmp.eq.s32.totalorder %s41, 0
      %p461 = por %p459, %p460
      %s463 = sadd.s32 %s462, 1
      %p466 = scmp.eq.s32.totalorder %s35, 1
      %p467 = scmp.ne.s32.totalorder %s462, %s464
      %p468 = scmp.eq.s32.totalorder %s35, 0
      %p469 = por %p467, %p468
      %p470 = scmp.ne.s32.totalorder %s462, %s464
      %p471 = scmp.eq.s32.totalorder %s40, 1
      %p472 = por %p470, %p471
      %p473 = scmp.ne.s32.totalorder %s464, %s465
      %p474 = scmp.eq.s32.totalorder %s40, 0
      %p475 = por %p473, %p474
      %p476 = scmp.ne.s32.totalorder %s464, %s465
      %p477 = scmp.eq.s32.totalorder %s41, 1
      %p478 = por %p476, %p477
      %p480 = scmp.ne.s32.totalorder %s465, %s479
      %p481 = scmp.eq.s32.totalorder %s41, 0
      %p482 = por %p480, %p481
      %s483 = ssub.s32 %s35, %s42
      %p484 = scmp.eq.s32.totalorder %s483, 0
      %s486 = sadd.s32 %s485, 1
      %s487 = scalar_select %p484, %s485, %s486
      %p490 = pneg %p484
      %p491 = scmp.eq.s32.totalorder %s35, 1
      %p492 = por %p490, %p491
      %p493 = scmp.ne.s32.totalorder %s485, %s488
      %p494 = scmp.eq.s32.totalorder %s35, 0
      %p495 = por %p493, %p494
      %p496 = scmp.ne.s32.totalorder %s485, %s488
      %p497 = scmp.eq.s32.totalorder %s40, 1
      %p498 = por %p496, %p497
      %p499 = scmp.ne.s32.totalorder %s488, %s489
      %p500 = scmp.eq.s32.totalorder %s40, 0
      %p501 = por %p499, %p500
      %p502 = scmp.ne.s32.totalorder %s488, %s489
      %p503 = scmp.eq.s32.totalorder %s41, 1
      %p504 = por %p502, %p503
      %p506 = scmp.ne.s32.totalorder %s489, %s505
      %p507 = scmp.eq.s32.totalorder %s41, 0
      %p508 = por %p506, %p507
      %s509 = ssub.s32 %s35, %s42
      %p510 = scmp.eq.s32.totalorder %s509, 0
      %s512 = sadd.s32 %s511, 1
      %s513 = scalar_select %p510, %s511, %s512
      %p516 = pneg %p510
      %p517 = scmp.eq.s32.totalorder %s35, 1
      %p518 = por %p516, %p517
      %p519 = scmp.ne.s32.totalorder %s511, %s514
      %p520 = scmp.eq.s32.totalorder %s35, 0
      %p521 = por %p519, %p520
      %p522 = scmp.ne.s32.totalorder %s511, %s514
      %p523 = scmp.eq.s32.totalorder %s40, 1
      %p524 = por %p522, %p523
      %p525 = scmp.ne.s32.totalorder %s514, %s515
      %p526 = scmp.eq.s32.totalorder %s40, 0
      %p527 = por %p525, %p526
      %p528 = scmp.ne.s32.totalorder %s514, %s515
      %p529 = scmp.eq.s32.totalorder %s41, 1
      %p530 = por %p528, %p529
      %p532 = scmp.ne.s32.totalorder %s515, %s531
      %p533 = scmp.eq.s32.totalorder %s41, 0
      %p534 = por %p532, %p533
      %s535 = ssub.s32 %s35, %s42
      %p536 = scmp.eq.s32.totalorder %s535, 0
      %s538 = sadd.s32 %s537, 1
      %s539 = scalar_select %p536, %s537, %s538
      %p542 = pneg %p536
      %p543 = scmp.eq.s32.totalorder %s35, 1
      %p544 = por %p542, %p543
      %p545 = scmp.ne.s32.totalorder %s537, %s540
      %p546 = scmp.eq.s32.totalorder %s35, 0
      %p547 = por %p545, %p546
      %p548 = scmp.ne.s32.totalorder %s537, %s540
      %p549 = scmp.eq.s32.totalorder %s40, 1
      %p550 = por %p548, %p549
      %p551 = scmp.ne.s32.totalorder %s540, %s541
      %p552 = scmp.eq.s32.totalorder %s40, 0
      %p553 = por %p551, %p552
      %p554 = scmp.ne.s32.totalorder %s540, %s541
      %p555 = scmp.eq.s32.totalorder %s41, 1
      %p556 = por %p554, %p555
      %p558 = scmp.ne.s32.totalorder %s541, %s557
      %p559 = scmp.eq.s32.totalorder %s41, 0
      %p560 = por %p558, %p559
      %p561 = scmp.le.s32.totalorder 1, %s35
      %p562 = scmp.lt.s32.totalorder %s35, 3
      %p563 = pnand %p561, %p562
      %p564 = pneg %p563
      // Predicated region
      $region9: #{decoder_layer.1} parent=5 // pred_check
        _
      $region10: #{decoder_layer.1} parent=5 // pred_check_branch
        %566 = sbr.rel (%p563) target = $region12
      $region11: #{decoder_layer.1} parent=5 // pred_region
        %s567 = ssub.s32 %s35, 1
        // Predicated region
        $region13: #{decoder_layer.1} parent=11 // pred_check
          %p568 = pneg %p160
        $region14: #{decoder_layer.1} parent=11 // pred_check_branch
          %570 = sbr.rel (%p568) target = $region16
        $region15: #{decoder_layer.1} parent=11 // pred_region
          _
        $region16: #{decoder_layer.1} parent=11 // pred_fallthru
          _
        // Predicated region
        $region17: #{decoder_layer.1} parent=11 // pred_check
          %p571 = pneg %p181
        $region18: #{decoder_layer.1} parent=11 // pred_check_branch
          %573 = sbr.rel (%p571) target = $region20
        $region19: #{decoder_layer.1} parent=11 // pred_region
          _
        $region20: #{decoder_layer.1} parent=11 // pred_fallthru
          _
        // Predicated region
        $region21: #{decoder_layer.1} parent=11 // pred_check
          %p574 = pneg %p202
        $region22: #{decoder_layer.1} parent=11 // pred_check_branch
          %576 = sbr.rel (%p574) target = $region24
        $region23: #{decoder_layer.1} parent=11 // pred_region
          _
        $region24: #{decoder_layer.1} parent=11 // pred_fallthru
          _
        // Predicated region
        $region25: #{decoder_layer.1} parent=11 // pred_check
          %p577 = pneg %p223
        $region26: #{decoder_layer.1} parent=11 // pred_check_branch
          %579 = sbr.rel (%p577) target = $region28
        $region27: #{decoder_layer.1} parent=11 // pred_region
          _
        $region28: #{decoder_layer.1} parent=11 // pred_fallthru
          _
        // Predicated region
        $region29: #{decoder_layer.1} parent=11 // pred_check
          %p580 = pneg %p244
        $region30: #{decoder_layer.1} parent=11 // pred_check_branch
          %582 = sbr.rel (%p580) target = $region32
        $region31: #{decoder_layer.1} parent=11 // pred_region
          _
        $region32: #{decoder_layer.1} parent=11 // pred_fallthru
          _
        // Predicated region
        $region33: #{decoder_layer.1} parent=11 // pred_check
          %p583 = pneg %p265
        $region34: #{decoder_layer.1} parent=11 // pred_check_branch
          %585 = sbr.rel (%p583) target = $region36
        $region35: #{decoder_layer.1} parent=11 // pred_region
          _
        $region36: #{decoder_layer.1} parent=11 // pred_fallthru
          _
        // Predicated region
        $region37: #{decoder_layer.1} parent=11 // pred_check
          %p586 = pneg %p286
        $region38: #{decoder_layer.1} parent=11 // pred_check_branch
          %588 = sbr.rel (%p586) target = $region40
        $region39: #{decoder_layer.1} parent=11 // pred_region
          _
        $region40: #{decoder_layer.1} parent=11 // pred_fallthru
          _
        // Predicated region
        $region41: #{decoder_layer.1} parent=11 // pred_check
          %p589 = pneg %p307
        $region42: #{decoder_layer.1} parent=11 // pred_check_branch
          %591 = sbr.rel (%p589) target = $region44
        $region43: #{decoder_layer.1} parent=11 // pred_region
          _
        $region44: #{decoder_layer.1} parent=11 // pred_fallthru
          _
        // Predicated region
        $region45: #{decoder_layer.1} parent=11 // pred_check
          %p592 = pneg %p328
        $region46: #{decoder_layer.1} parent=11 // pred_check_branch
          %594 = sbr.rel (%p592) target = $region48
        $region47: #{decoder_layer.1} parent=11 // pred_region
          _
        $region48: #{decoder_layer.1} parent=11 // pred_fallthru
          _
        // Predicated region
        $region49: #{decoder_layer.1} parent=11 // pred_check
          %p595 = pneg %p349
        $region50: #{decoder_layer.1} parent=11 // pred_check_branch
          %597 = sbr.rel (%p595) target = $region52
        $region51: #{decoder_layer.1} parent=11 // pred_region
          _
        $region52: #{decoder_layer.1} parent=11 // pred_fallthru
          _
        // Predicated region
        $region53: #{decoder_layer.1} parent=11 // pred_check
          %p598 = pneg %p370
        $region54: #{decoder_layer.1} parent=11 // pred_check_branch
          %600 = sbr.rel (%p598) target = $region56
        $region55: #{decoder_layer.1} parent=11 // pred_region
          _
        $region56: #{decoder_layer.1} parent=11 // pred_fallthru
          _
        // Predicated region
        $region57: #{decoder_layer.1} parent=11 // pred_check
          %p601 = pneg %p391
        $region58: #{decoder_layer.1} parent=11 // pred_check_branch
          %603 = sbr.rel (%p601) target = $region60
        $region59: #{decoder_layer.1} parent=11 // pred_region
          _
        $region60: #{decoder_layer.1} parent=11 // pred_fallthru
          _
        // Predicated region
        $region61: #{decoder_layer.1} parent=11 // pred_check
          %p604 = pneg %p412
        $region62: #{decoder_layer.1} parent=11 // pred_check_branch
          %606 = sbr.rel (%p604) target = $region64
        $region63: #{decoder_layer.1} parent=11 // pred_region
          _
        $region64: #{decoder_layer.1} parent=11 // pred_fallthru
          _
        // Predicated region
        $region65: #{decoder_layer.1} parent=11 // pred_check
          %p607 = pneg %p433
        $region66: #{decoder_layer.1} parent=11 // pred_check_branch
          %609 = sbr.rel (%p607) target = $region68
        $region67: #{decoder_layer.1} parent=11 // pred_region
          _
        $region68: #{decoder_layer.1} parent=11 // pred_fallthru
          _
        // Predicated region
        $region69: #{decoder_layer.1} parent=11 // pred_check
          %p610 = pneg %p454
        $region70: #{decoder_layer.1} parent=11 // pred_check_branch
          %612 = sbr.rel (%p610) target = $region72
        $region71: #{decoder_layer.1} parent=11 // pred_region
          _
        $region72: #{decoder_layer.1} parent=11 // pred_fallthru
          _
        // Predicated region
        $region73: #{decoder_layer.1} parent=11 // pred_check
          %p613 = pneg %p475
        $region74: #{decoder_layer.1} parent=11 // pred_check_branch
          %615 = sbr.rel (%p613) target = $region76
        $region75: #{decoder_layer.1} parent=11 // pred_region
          _
        $region76: #{decoder_layer.1} parent=11 // pred_fallthru
          _
      $region12: #{decoder_layer.1} parent=5 // pred_fallthru
        _
      %p616 = scmp.lt.s32.totalorder %s35, 2
      // Predicated region
      $region77: #{decoder_layer.1} parent=5 // pred_check
        %p617 = pneg %p616
      $region78: #{decoder_layer.1} parent=5 // pred_check_branch
        %619 = sbr.rel (%p617) target = $region80
      $region79: #{decoder_layer.1} parent=5 // pred_region
        // Predicated region
        $region81: #{decoder_layer.1} parent=79 // pred_check
          %p620 = pneg %p55
        $region82: #{decoder_layer.1} parent=79 // pred_check_branch
          %622 = sbr.rel (%p620) target = $region84
        $region83: #{decoder_layer.1} parent=79 // pred_region
          %p623 = scmp.lt.s32.totalorder %s35, 1
          %s624 = scalar_select %p623, %s35, 1
          %s625 = smul.addr %s624, 8
          %s626 = scalar_lea.vmem %s0, %s625
        $region84: #{decoder_layer.1} parent=79 // pred_fallthru
          _
        // Predicated region
        $region85: #{decoder_layer.1} parent=79 // pred_check
          %p627 = pneg %p81
        $region86: #{decoder_layer.1} parent=79 // pred_check_branch
          %629 = sbr.rel (%p627) target = $region88
        $region87: #{decoder_layer.1} parent=79 // pred_region
          %p630 = scmp.lt.s32.totalorder %s35, 1
          %s631 = scalar_select %p630, %s35, 1
          %s632 = smul.addr %s631, 8
          %s633 = scalar_lea.vmem %s1, %s632
        $region88: #{decoder_layer.1} parent=79 // pred_fallthru
          _
        // Predicated region
        $region89: #{decoder_layer.1} parent=79 // pred_check
          %p634 = pneg %p107
        $region90: #{decoder_layer.1} parent=79 // pred_check_branch
          %636 = sbr.rel (%p634) target = $region92
        $region91: #{decoder_layer.1} parent=79 // pred_region
          %p637 = scmp.lt.s32.totalorder %s35, 1
          %s638 = scalar_select %p637, %s35, 1
          %s639 = smul.addr %s638, 8
          %s640 = scalar_lea.vmem %s2, %s639
        $region92: #{decoder_layer.1} parent=79 // pred_fallthru
          _
        // Predicated region
        $region93: #{decoder_layer.1} parent=79 // pred_check
          %p641 = pneg %p133
        $region94: #{decoder_layer.1} parent=79 // pred_check_branch
          %643 = sbr.rel (%p641) target = $region96
        $region95: #{decoder_layer.1} parent=79 // pred_region
          %p644 = scmp.lt.s32.totalorder %s35, 1
          %s645 = scalar_select %p644, %s35, 1
          %s646 = smul.addr %s645, 8
          %s647 = scalar_lea.vmem %s3, %s646
        $region96: #{decoder_layer.1} parent=79 // pred_fallthru
          _
      $region80: #{decoder_layer.1} parent=5 // pred_fallthru
        _
      %p648 = scmp.le.s32.totalorder 1, %s35
      %p649 = scmp.lt.s32.totalorder %s35, 3
      %p650 = pnand %p648, %p649
      %p651 = pneg %p650
      // Predicated region
      $region97: #{decoder_layer.1} parent=5 // pred_check
        _
      $region98: #{decoder_layer.1} parent=5 // pred_check_branch
        %653 = sbr.rel (%p650) target = $region100
      $region99: #{decoder_layer.1} parent=5 // pred_region
        %s654 = ssub.s32 %s35, 1
        %p655 = scmp.lt.s32.totalorder %s40, 1
        %s656 = scalar_select %p655, %s40, 1
        %s657 = smul.addr %s656, 8
        %s658 = scalar_lea.vmem %s0, %s657
        %p659 = pneg %p61
        %p660 = pneg %p58
        %p661 = scmp.lt.s32.totalorder %s40, 1
        %s662 = scalar_select %p661, %s40, 1
        %s663 = smul.addr %s662, 8
        %s664 = scalar_lea.vmem %s1, %s663
        %p665 = pneg %p87
        %p666 = pneg %p84
        %p667 = scmp.lt.s32.totalorder %s40, 1
        %s668 = scalar_select %p667, %s40, 1
        %s669 = smul.addr %s668, 8
        %s670 = scalar_lea.vmem %s2, %s669
        %p671 = pneg %p113
        %p672 = pneg %p110
        %p673 = scmp.lt.s32.totalorder %s40, 1
        %s674 = scalar_select %p673, %s40, 1
        %s675 = smul.addr %s674, 8
        %s676 = scalar_lea.vmem %s3, %s675
        %p677 = pneg %p139
        %p678 = pneg %p136
        %p679 = pneg %p160
        %p680 = pneg %p157
        %p681 = pneg %p181
        %p682 = pneg %p178
        %p683 = pneg %p202
        %p684 = pneg %p199
        %p685 = pneg %p223
        %p686 = pneg %p220
        %p687 = pneg %p244
        %p688 = pneg %p241
        %p689 = pneg %p265
        %p690 = pneg %p262
        %p691 = pneg %p286
        %p692 = pneg %p283
        %p693 = pneg %p307
        %p694 = pneg %p304
        %p695 = pneg %p328
        %p696 = pneg %p325
        %p697 = pneg %p349
        %p698 = pneg %p346
        %p699 = pneg %p370
        %p700 = pneg %p367
        %p701 = pneg %p391
        %p702 = pneg %p388
        %p703 = pneg %p412
        %p704 = pneg %p409
        %p705 = pneg %p433
        %p706 = pneg %p430
        %p707 = pneg %p454
        %p708 = pneg %p451
        %p709 = pneg %p475
        %p710 = pneg %p472
        %p711 = pneg %p501
        %p712 = pneg %p498
        %s713 = sand.u32 %s488, 1
        %s714 = scalar_lea.sflag [#allocation3], %s713
        %s715 = sand.u32 %s488, 1
        %s716 = smul.addr %s715, 8
        %s717 = scalar_lea.vmem [#allocation2], %s716
        %p718 = pneg %p527
        %p719 = pneg %p524
        %s720 = sand.u32 %s40, 1
        %s721 = scalar_lea.sflag [#allocation5], %s720
        %s722 = sand.u32 %s514, 1
        %s723 = smul.addr %s722, 32
        %s724 = scalar_lea.vmem [#allocation4], %s723
        %p725 = pneg %p553
        %p726 = pneg %p550
        %s727 = sand.u32 %s40, 1
        %s728 = scalar_lea.sflag [#allocation5], %s727
        %s729 = sand.u32 %s540, 1
        %s730 = smul.addr %s729, 32
        %s731 = scalar_lea.vmem [#allocation6], %s730
        %p732 = scmp.lt.s32.totalorder %s40, 1
        %s733 = scalar_select %p732, %s40, 1
        %s734 = smul.addr %s733, 8
        %s735 = scalar_lea.vmem %s0, %s734
        %p736 = scmp.lt.s32.totalorder %s40, 1
        %s737 = scalar_select %p736, %s40, 1
        %s738 = smul.addr %s737, 8
        %s739 = scalar_lea.vmem %s1, %s738
        %p740 = scmp.lt.s32.totalorder %s40, 1
        %s741 = scalar_select %p740, %s40, 1
        %s742 = smul.addr %s741, 8
        %s743 = scalar_lea.vmem %s2, %s742
        %p744 = scmp.lt.s32.totalorder %s40, 1
        %s745 = scalar_select %p744, %s40, 1
        %s746 = smul.addr %s745, 8
        %s747 = scalar_lea.vmem %s3, %s746
        %v749 = vld [vmem:[%s735] sm:$0xff]
        %v750 = vld [vmem:[%s739] sm:$0xff]
        %v751 = vld [vmem:[%s743] sm:$0xff]
        %v752 = vld [vmem:[%s4] sm:$0xf]
        %v753 = vld [vmem:[%s4 + $0x4] sm:$0xf]
        %v754 = vld [vmem:[%s4 + $0x8] sm:$0xf]
        %v755 = vld [vmem:[%s4 + $0xc] sm:$0xf]
        %v756 = vld [vmem:[%s4 + $0x10] sm:$0xf]
        %v757 = vld [vmem:[%s4 + $0x14] sm:$0xf]
        %v758 = vld [vmem:[%s4 + $0x18] sm:$0xf]
        %v759 = vld [vmem:[%s4 + $0x1c] sm:$0xf]
        %v760 = vld [vmem:[%s4 + $0x20] sm:$0xf]
        %v761 = vld [vmem:[%s4 + $0x24] sm:$0xf]
        %v762 = vld [vmem:[%s4 + $0x28] sm:$0xf]
        %v763 = vld [vmem:[%s4 + $0x2c] sm:$0xf]
        %v764 = vld [vmem:[%s4 + $0x30] sm:$0xf]
        %v765 = vld [vmem:[%s4 + $0x34] sm:$0xf]
        %v766 = vld [vmem:[%s4 + $0x38] sm:$0xf]
        %v767 = vld [vmem:[%s4 + $0x3c] sm:$0xf]
        %v768 = vld [vmem:[%s5] sm:$0xf]
        %v769 = vld [vmem:[%s5 + $0x4] sm:$0xf]
        %v770 = vld [vmem:[%s5 + $0x8] sm:$0xf]
        %v771 = vld [vmem:[%s5 + $0xc] sm:$0xf]
        %v772 = vld [vmem:[%s5 + $0x10] sm:$0xf]
        %v773 = vld [vmem:[%s5 + $0x14] sm:$0xf]
        %v774 = vld [vmem:[%s5 + $0x18] sm:$0xf]
        %v775 = vld [vmem:[%s5 + $0x1c] sm:$0xf]
        %v776 = vld [vmem:[%s5 + $0x20] sm:$0xf]
        %v777 = vld [vmem:[%s5 + $0x24] sm:$0xf]
        %v778 = vld [vmem:[%s5 + $0x28] sm:$0xf]
        %v779 = vld [vmem:[%s5 + $0x2c] sm:$0xf]
        %v780 = vld [vmem:[%s5 + $0x30] sm:$0xf]
        %v781 = vld [vmem:[%s5 + $0x34] sm:$0xf]
        %v782 = vld [vmem:[%s5 + $0x38] sm:$0xf]
        %v783 = vld [vmem:[%s5 + $0x3c] sm:$0xf]
        %v784 = vld [vmem:[%s6] sm:$0xf]
        %v785 = vld [vmem:[%s6 + $0x4] sm:$0xf]
        %v786 = vld [vmem:[%s6 + $0x8] sm:$0xf]
        %v787 = vld [vmem:[%s6 + $0xc] sm:$0xf]
        %v788 = vld [vmem:[%s6 + $0x10] sm:$0xf]
        %v789 = vld [vmem:[%s6 + $0x14] sm:$0xf]
        %v790 = vld [vmem:[%s6 + $0x18] sm:$0xf]
        %v791 = vld [vmem:[%s6 + $0x1c] sm:$0xf]
        %v792 = vld [vmem:[%s6 + $0x20] sm:$0xf]
        %v793 = vld [vmem:[%s6 + $0x24] sm:$0xf]
        %v794 = vld [vmem:[%s6 + $0x28] sm:$0xf]
        %v795 = vld [vmem:[%s6 + $0x2c] sm:$0xf]
        %v796 = vld [vmem:[%s6 + $0x30] sm:$0xf]
        %v797 = vld [vmem:[%s6 + $0x34] sm:$0xf]
        %v798 = vld [vmem:[%s6 + $0x38] sm:$0xf]
        %v799 = vld [vmem:[%s6 + $0x3c] sm:$0xf]
        %v800 = vld [vmem:[%s7] sm:$0xf]
        %v801 = vld [vmem:[%s7 + $0x4] sm:$0xf]
        %v802 = vld [vmem:[%s7 + $0x8] sm:$0xf]
        %v803 = vld [vmem:[%s7 + $0xc] sm:$0xf]
        %v804 = vld [vmem:[%s8] sm:$0x1]
        %v805 = vld [vmem:[%s9] sm:$0x1]
        %v806 = vpack.c.bf16 %v749, %v749
        %v811 = vunpack.c.l.b16 %v752
        %v812 = vunpack.c.l.b16 %v753
        %v813 = vunpack.c.l.b16 %v754
        %v814 = vunpack.c.l.b16 %v755
        %v815 = vpack.c.b16 %v812, %v811
        %v816 = vpack.c.b16 %v814, %v813
        %vm819 = vcmask 261120
        %v821 = vsel %vm819, %v806, 0
        %823 = vmatpush.bf16.msra.mxu0 0
        %824 = vmatpush.bf16.msra.mxu0 0
        %825 = vmatpush.bf16.msra.mxu0 0
        %826 = vmatpush.bf16.msra.mxu0 0
        %827 = vmatpush.bf16.msra.mxu0 0
        %828 = vmatpush.bf16.msra.mxu0 0
        %829 = vmatpush.bf16.msra.mxu0 %v816
        %830 = vmatpush.bf16.msra.mxu0 %v815
        %831 = vmatmul.bf16.gmra.mxu0 %v821
        %v832 = vpop.f32.mrf.mxu0
        %v833 = vadd.f32 0.0, %v832
        %v834 = vpop.f32.mrf.mxu0
        %835 = vdwg.mxu0
        %v840 = vunpack.c.l.b16 %v756
        %v841 = vunpack.c.l.b16 %v757
        %v842 = vunpack.c.l.b16 %v758
        %v843 = vunpack.c.l.b16 %v759
        %v844 = vpack.c.b16 %v841, %v840
        %v845 = vpack.c.b16 %v843, %v842
        %848 = vmatpush.bf16.msra.mxu0 0
        %849 = vmatpush.bf16.msra.mxu0 0
        %850 = vmatpush.bf16.msra.mxu0 0
        %851 = vmatpush.bf16.msra.mxu0 0
        %852 = vmatpush.bf16.msra.mxu0 0
        %853 = vmatpush.bf16.msra.mxu0 0
        %854 = vmatpush.bf16.msra.mxu0 %v845
        %855 = vmatpush.bf16.msra.mxu0 %v844
        %856 = vmatmul.bf16.gmra.mxu0 %v821
        %v857 = vpop.f32.mrf.mxu0
        %v858 = vadd.f32 0.0, %v857
        %v859 = vpop.f32.mrf.mxu0
        %860 = vdwg.mxu0
        %v865 = vunpack.c.l.b16 %v760
        %v866 = vunpack.c.l.b16 %v761
        %v867 = vunpack.c.l.b16 %v762
        %v868 = vunpack.c.l.b16 %v763
        %v869 = vpack.c.b16 %v866, %v865
        %v870 = vpack.c.b16 %v868, %v867
        %873 = vmatpush.bf16.msra.mxu0 0
        %874 = vmatpush.bf16.msra.mxu0 0
        %875 = vmatpush.bf16.msra.mxu0 0
        %876 = vmatpush.bf16.msra.mxu0 0
        %877 = vmatpush.bf16.msra.mxu0 0
        %878 = vmatpush.bf16.msra.mxu0 0
        %879 = vmatpush.bf16.msra.mxu0 %v870
        %880 = vmatpush.bf16.msra.mxu0 %v869
        %881 = vmatmul.bf16.gmra.mxu0 %v821
        %v882 = vpop.f32.mrf.mxu0
        %v883 = vadd.f32 0.0, %v882
        %v884 = vpop.f32.mrf.mxu0
        %885 = vdwg.mxu0
        %v890 = vunpack.c.l.b16 %v764
        %v891 = vunpack.c.l.b16 %v765
        %v892 = vunpack.c.l.b16 %v766
        %v893 = vunpack.c.l.b16 %v767
        %v894 = vpack.c.b16 %v891, %v890
        %v895 = vpack.c.b16 %v893, %v892
        %898 = vmatpush.bf16.msra.mxu0 0
        %899 = vmatpush.bf16.msra.mxu0 0
        %900 = vmatpush.bf16.msra.mxu0 0
        %901 = vmatpush.bf16.msra.mxu0 0
        %902 = vmatpush.bf16.msra.mxu0 0
        %903 = vmatpush.bf16.msra.mxu0 0
        %904 = vmatpush.bf16.msra.mxu0 %v895
        %905 = vmatpush.bf16.msra.mxu0 %v894
        %906 = vmatmul.bf16.gmra.mxu0 %v821
        %v907 = vpop.f32.mrf.mxu0
        %v908 = vadd.f32 0.0, %v907
        %v909 = vpop.f32.mrf.mxu0
        %910 = vdwg.mxu0
        %v915 = vunpack.c.l.b16 %v768
        %v916 = vunpack.c.l.b16 %v769
        %v917 = vunpack.c.l.b16 %v770
        %v918 = vunpack.c.l.b16 %v771
        %v919 = vpack.c.b16 %v916, %v915
        %v920 = vpack.c.b16 %v918, %v917
        %923 = vmatpush.bf16.msra.mxu0 0
        %924 = vmatpush.bf16.msra.mxu0 0
        %925 = vmatpush.bf16.msra.mxu0 0
        %926 = vmatpush.bf16.msra.mxu0 0
        %927 = vmatpush.bf16.msra.mxu0 0
        %928 = vmatpush.bf16.msra.mxu0 0
        %929 = vmatpush.bf16.msra.mxu0 %v920
        %930 = vmatpush.bf16.msra.mxu0 %v919
        %931 = vmatmul.bf16.gmra.mxu0 %v821
        %v932 = vpop.f32.mrf.mxu0
        %v933 = vadd.f32 0.0, %v932
        %v934 = vpop.f32.mrf.mxu0
        %935 = vdwg.mxu0
        %v940 = vunpack.c.l.b16 %v772
        %v941 = vunpack.c.l.b16 %v773
        %v942 = vunpack.c.l.b16 %v774
        %v943 = vunpack.c.l.b16 %v775
        %v944 = vpack.c.b16 %v941, %v940
        %v945 = vpack.c.b16 %v943, %v942
        %948 = vmatpush.bf16.msra.mxu0 0
        %949 = vmatpush.bf16.msra.mxu0 0
        %950 = vmatpush.bf16.msra.mxu0 0
        %951 = vmatpush.bf16.msra.mxu0 0
        %952 = vmatpush.bf16.msra.mxu0 0
        %953 = vmatpush.bf16.msra.mxu0 0
        %954 = vmatpush.bf16.msra.mxu0 %v945
        %955 = vmatpush.bf16.msra.mxu0 %v944
        %956 = vmatmul.bf16.gmra.mxu0 %v821
        %v957 = vpop.f32.mrf.mxu0
        %v958 = vadd.f32 0.0, %v957
        %v959 = vpop.f32.mrf.mxu0
        %960 = vdwg.mxu0
        %v965 = vunpack.c.l.b16 %v776
        %v966 = vunpack.c.l.b16 %v777
        %v967 = vunpack.c.l.b16 %v778
        %v968 = vunpack.c.l.b16 %v779
        %v969 = vpack.c.b16 %v966, %v965
        %v970 = vpack.c.b16 %v968, %v967
        %973 = vmatpush.bf16.msra.mxu0 0
        %974 = vmatpush.bf16.msra.mxu0 0
        %975 = vmatpush.bf16.msra.mxu0 0
        %976 = vmatpush.bf16.msra.mxu0 0
        %977 = vmatpush.bf16.msra.mxu0 0
        %978 = vmatpush.bf16.msra.mxu0 0
        %979 = vmatpush.bf16.msra.mxu0 %v970
        %980 = vmatpush.bf16.msra.mxu0 %v969
        %981 = vmatmul.bf16.gmra.mxu0 %v821
        %v982 = vpop.f32.mrf.mxu0
        %v983 = vadd.f32 0.0, %v982
        %v984 = vpop.f32.mrf.mxu0
        %985 = vdwg.mxu0
        %v990 = vunpack.c.l.b16 %v780
        %v991 = vunpack.c.l.b16 %v781
        %v992 = vunpack.c.l.b16 %v782
        %v993 = vunpack.c.l.b16 %v783
        %v994 = vpack.c.b16 %v991, %v990
        %v995 = vpack.c.b16 %v993, %v992
        %998 = vmatpush.bf16.msra.mxu0 0
        %999 = vmatpush.bf16.msra.mxu0 0
        %1000 = vmatpush.bf16.msra.mxu0 0
        %1001 = vmatpush.bf16.msra.mxu0 0
        %1002 = vmatpush.bf16.msra.mxu0 0
        %1003 = vmatpush.bf16.msra.mxu0 0
        %1004 = vmatpush.bf16.msra.mxu0 %v995
        %1005 = vmatpush.bf16.msra.mxu0 %v994
        %1006 = vmatmul.bf16.gmra.mxu0 %v821
        %v1007 = vpop.f32.mrf.mxu0
        %v1008 = vadd.f32 0.0, %v1007
        %v1009 = vpop.f32.mrf.mxu0
        %1010 = vdwg.mxu0
        %v1015 = vunpack.c.l.b16 %v784
        %v1016 = vunpack.c.l.b16 %v785
        %v1017 = vunpack.c.l.b16 %v786
        %v1018 = vunpack.c.l.b16 %v787
        %v1019 = vpack.c.b16 %v1016, %v1015
        %v1020 = vpack.c.b16 %v1018, %v1017
        %1023 = vmatpush.bf16.msra.mxu0 0
        %1024 = vmatpush.bf16.msra.mxu0 0
        %1025 = vmatpush.bf16.msra.mxu0 0
        %1026 = vmatpush.bf16.msra.mxu0 0
        %1027 = vmatpush.bf16.msra.mxu0 0
        %1028 = vmatpush.bf16.msra.mxu0 0
        %1029 = vmatpush.bf16.msra.mxu0 %v1020
        %1030 = vmatpush.bf16.msra.mxu0 %v1019
        %1031 = vmatmul.bf16.gmra.mxu0 %v821
        %v1032 = vpop.f32.mrf.mxu0
        %v1033 = vadd.f32 0.0, %v1032
        %v1034 = vpop.f32.mrf.mxu0
        %1035 = vdwg.mxu0
        %v1040 = vunpack.c.l.b16 %v788
        %v1041 = vunpack.c.l.b16 %v789
        %v1042 = vunpack.c.l.b16 %v790
        %v1043 = vunpack.c.l.b16 %v791
        %v1044 = vpack.c.b16 %v1041, %v1040
        %v1045 = vpack.c.b16 %v1043, %v1042
        %1048 = vmatpush.bf16.msra.mxu0 0
        %1049 = vmatpush.bf16.msra.mxu0 0
        %1050 = vmatpush.bf16.msra.mxu0 0
        %1051 = vmatpush.bf16.msra.mxu0 0
        %1052 = vmatpush.bf16.msra.mxu0 0
        %1053 = vmatpush.bf16.msra.mxu0 0
        %1054 = vmatpush.bf16.msra.mxu0 %v1045
        %1055 = vmatpush.bf16.msra.mxu0 %v1044
        %1056 = vmatmul.bf16.gmra.mxu0 %v821
        %v1057 = vpop.f32.mrf.mxu0
        %v1058 = vadd.f32 0.0, %v1057
        %v1059 = vpop.f32.mrf.mxu0
        %1060 = vdwg.mxu0
        %v1065 = vunpack.c.l.b16 %v792
        %v1066 = vunpack.c.l.b16 %v793
        %v1067 = vunpack.c.l.b16 %v794
        %v1068 = vunpack.c.l.b16 %v795
        %v1069 = vpack.c.b16 %v1066, %v1065
        %v1070 = vpack.c.b16 %v1068, %v1067
        %1073 = vmatpush.bf16.msra.mxu0 0
        %1074 = vmatpush.bf16.msra.mxu0 0
        %1075 = vmatpush.bf16.msra.mxu0 0
        %1076 = vmatpush.bf16.msra.mxu0 0
        %1077 = vmatpush.bf16.msra.mxu0 0
        %1078 = vmatpush.bf16.msra.mxu0 0
        %1079 = vmatpush.bf16.msra.mxu0 %v1070
        %1080 = vmatpush.bf16.msra.mxu0 %v1069
        %1081 = vmatmul.bf16.gmra.mxu0 %v821
        %v1082 = vpop.f32.mrf.mxu0
        %v1083 = vadd.f32 0.0, %v1082
        %v1084 = vpop.f32.mrf.mxu0
        %1085 = vdwg.mxu0
        %v1090 = vunpack.c.l.b16 %v796
        %v1091 = vunpack.c.l.b16 %v797
        %v1092 = vunpack.c.l.b16 %v798
        %v1093 = vunpack.c.l.b16 %v799
        %v1094 = vpack.c.b16 %v1091, %v1090
        %v1095 = vpack.c.b16 %v1093, %v1092
        %1098 = vmatpush.bf16.msra.mxu0 0
        %1099 = vmatpush.bf16.msra.mxu0 0
        %1100 = vmatpush.bf16.msra.mxu0 0
        %1101 = vmatpush.bf16.msra.mxu0 0
        %1102 = vmatpush.bf16.msra.mxu0 0
        %1103 = vmatpush.bf16.msra.mxu0 0
        %1104 = vmatpush.bf16.msra.mxu0 %v1095
        %1105 = vmatpush.bf16.msra.mxu0 %v1094
        %1106 = vmatmul.bf16.gmra.mxu0 %v821
        %v1107 = vpop.f32.mrf.mxu0
        %v1108 = vadd.f32 0.0, %v1107
        %v1109 = vpop.f32.mrf.mxu0
        %1110 = vdwg.mxu0
        %v1111 = vpack.c.bf16 %v833, %v833
        %v1112 = vpack.c.bf16 %v858, %v858
        %v1113 = vpack.c.bf16 %v883, %v883
        %v1114 = vpack.c.bf16 %v908, %v908
        %v1115 = vpack.c.bf16 %v933, %v933
        %v1116 = vpack.c.bf16 %v958, %v958
        %v1117 = vpack.c.bf16 %v983, %v983
        %v1118 = vpack.c.bf16 %v1008, %v1008
        %vm1119 = vcmask 64512
        %v1121 = vsel %vm1119, %v1111, 0
        %v1124 = vsel %vm1119, %v1115, 0
        %1126 = vmatpush.bf16.xpose.msra.mxu0 0
        %1127 = vmatpush.bf16.xpose.msra.mxu0 0
        %1128 = vmatpush.bf16.xpose.msra.mxu0 0
        %1129 = vmatpush.bf16.xpose.msra.mxu0 0
        %1130 = vmatpush.bf16.xpose.msra.mxu0 0
        %1131 = vmatpush.bf16.xpose.msra.mxu0 0
        %1132 = vmatpush.bf16.xpose.msra.mxu0 0
        %1133 = vmatpush.bf16.xpose.msra.mxu0 %v1124
        %1134 = vmatmul.bf16.gmra.mxu0 %v1121
        %v1135 = vpop.f32.mrf.mxu0
        %v1136 = vadd.f32 0.0, %v1135
        %v1137 = vpop.f32.mrf.mxu0
        %1138 = vdwg.mxu0
        %v1140 = vsel %vm1119, %v1112, 0
        %v1143 = vsel %vm1119, %v1116, 0
        %1145 = vmatpush.bf16.xpose.msra.mxu0 0
        %1146 = vmatpush.bf16.xpose.msra.mxu0 0
        %1147 = vmatpush.bf16.xpose.msra.mxu0 0
        %1148 = vmatpush.bf16.xpose.msra.mxu0 0
        %1149 = vmatpush.bf16.xpose.msra.mxu0 0
        %1150 = vmatpush.bf16.xpose.msra.mxu0 0
        %1151 = vmatpush.bf16.xpose.msra.mxu0 0
        %1152 = vmatpush.bf16.xpose.msra.mxu0 %v1143
        %1153 = vmatmul.bf16.gmra.mxu0 %v1140
        %v1154 = vpop.f32.mrf.mxu0
        %v1155 = vadd.f32 0.0, %v1154
        %v1156 = vpop.f32.mrf.mxu0
        %1157 = vdwg.mxu0
        %v1159 = vsel %vm1119, %v1113, 0
        %v1162 = vsel %vm1119, %v1117, 0
        %1164 = vmatpush.bf16.xpose.msra.mxu0 0
        %1165 = vmatpush.bf16.xpose.msra.mxu0 0
        %1166 = vmatpush.bf16.xpose.msra.mxu0 0
        %1167 = vmatpush.bf16.xpose.msra.mxu0 0
        %1168 = vmatpush.bf16.xpose.msra.mxu0 0
        %1169 = vmatpush.bf16.xpose.msra.mxu0 0
        %1170 = vmatpush.bf16.xpose.msra.mxu0 0
        %1171 = vmatpush.bf16.xpose.msra.mxu0 %v1162
        %1172 = vmatmul.bf16.gmra.mxu0 %v1159
        %v1173 = vpop.f32.mrf.mxu0
        %v1174 = vadd.f32 0.0, %v1173
        %v1175 = vpop.f32.mrf.mxu0
        %1176 = vdwg.mxu0
        %v1178 = vsel %vm1119, %v1114, 0
        %v1181 = vsel %vm1119, %v1118, 0
        %1183 = vmatpush.bf16.xpose.msra.mxu0 0
        %1184 = vmatpush.bf16.xpose.msra.mxu0 0
        %1185 = vmatpush.bf16.xpose.msra.mxu0 0
        %1186 = vmatpush.bf16.xpose.msra.mxu0 0
        %1187 = vmatpush.bf16.xpose.msra.mxu0 0
        %1188 = vmatpush.bf16.xpose.msra.mxu0 0
        %1189 = vmatpush.bf16.xpose.msra.mxu0 0
        %1190 = vmatpush.bf16.xpose.msra.mxu0 %v1181
        %1191 = vmatmul.bf16.gmra.mxu0 %v1178
        %v1192 = vpop.f32.mrf.mxu0
        %v1193 = vadd.f32 0.0, %v1192
        %v1194 = vpop.f32.mrf.mxu0
        %1195 = vdwg.mxu0
        %v1196 = vmul.f32 %v1136, 0.35355338
        %v1197 = vmul.f32 %v1155, 0.35355338
        %v1198 = vmul.f32 %v1174, 0.35355338
        %v1199 = vmul.f32 %v1193, 0.35355338
        %vm1200 = vcmp.gt.f32.partialorder %v751, 0.0
        %v1201 = vsel %vm1200, 1, 0
        %vm1202 = vcmp.eq.s32.totalorder %v1201, 1
        %v1203 = vsel %vm1202, -1e+09, %v1196
        %v1204 = vsel %vm1202, -1e+09, %v1197
        %v1205 = vsel %vm1202, -1e+09, %v1198
        %v1206 = vsel %vm1202, -1e+09, %v1199
        %v1207 = vsel %vm1119, %v1203, -inf
        %1208 = vmax.xlane.f32.xlu0 %v1207
        %v1209 = vpop.xlane.xlu0 %1208
        %v1210 = vsel %vm1119, %v1204, -inf
        %1211 = vmax.xlane.f32.xlu0 %v1210
        %v1212 = vpop.xlane.xlu0 %1211
        %v1213 = vsel %vm1119, %v1205, -inf
        %1214 = vmax.xlane.f32.xlu0 %v1213
        %v1215 = vpop.xlane.xlu0 %1214
        %v1216 = vsel %vm1119, %v1206, -inf
        %1217 = vmax.xlane.f32.xlu0 %v1216
        %v1218 = vpop.xlane.xlu0 %1217
        %v1219 = vsub.f32 %v1203, %v1209
        %v1220 = vsub.f32 %v1204, %v1212
        %v1221 = vsub.f32 %v1205, %v1215
        %v1222 = vsub.f32 %v1206, %v1218
        %v1223 = vmul.f32 %v1219, 1.442695
        %v1224 = vpow.pop %v1223
        %v1225 = vmul.f32 %v1220, 1.442695
        %v1226 = vpow.pop %v1225
        %v1227 = vmul.f32 %v1221, 1.442695
        %v1228 = vpow.pop %v1227
        %v1229 = vmul.f32 %v1222, 1.442695
        %v1230 = vpow.pop %v1229
        %v1231 = vsel %vm1119, %v1224, 0.0
        %1232 = vadd.xlane.f32.xlu0 %v1231
        %v1233 = vpop.xlane.xlu0 %1232
        %v1234 = vsel %vm1119, %v1226, 0.0
        %1235 = vadd.xlane.f32.xlu0 %v1234
        %v1236 = vpop.xlane.xlu0 %1235
        %v1237 = vsel %vm1119, %v1228, 0.0
        %1238 = vadd.xlane.f32.xlu0 %v1237
        %v1239 = vpop.xlane.xlu0 %1238
        %v1240 = vsel %vm1119, %v1230, 0.0
        %1241 = vadd.xlane.f32.xlu0 %v1240
        %v1242 = vpop.xlane.xlu0 %1241
        %v1243 = vrcp.pop %v1233
        %v1244 = vrcp.pop %v1236
        %v1245 = vrcp.pop %v1239
        %v1246 = vrcp.pop %v1242
        %v1247 = vmul.f32 %v1224, %v1243
        %v1248 = vmul.f32 %v1226, %v1244
        %v1249 = vmul.f32 %v1228, %v1245
        %v1250 = vmul.f32 %v1230, %v1246
        %v1251 = vpack.c.bf16 %v1247, %v1247
        %v1252 = vpack.c.bf16 %v1248, %v1248
        %v1253 = vpack.c.bf16 %v1249, %v1249
        %v1254 = vpack.c.bf16 %v1250, %v1250
        %v1255 = vpack.c.bf16 %v1033, %v1033
        %v1256 = vpack.c.bf16 %v1058, %v1058
        %v1257 = vpack.c.bf16 %v1083, %v1083
        %v1258 = vpack.c.bf16 %v1108, %v1108
        %v1260 = vsel %vm1119, %v1251, 0
        %vm1262 = vcmask 1043456
        %v1264 = vsel %vm1262, %v1255, 0
        %1266 = vmatpush.bf16.msra.mxu0 0
        %1267 = vmatpush.bf16.msra.mxu0 0
        %1268 = vmatpush.bf16.msra.mxu0 0
        %1269 = vmatpush.bf16.msra.mxu0 0
        %1270 = vmatpush.bf16.msra.mxu0 0
        %1271 = vmatpush.bf16.msra.mxu0 0
        %1272 = vmatpush.bf16.msra.mxu0 0
        %1273 = vmatpush.bf16.msra.mxu0 %v1264
        %1274 = vmatmul.bf16.gmra.mxu0 %v1260
        %v1275 = vpop.f32.mrf.mxu0
        %v1276 = vadd.f32 0.0, %v1275
        %v1277 = vpop.f32.mrf.mxu0
        %1278 = vdwg.mxu0
        %v1280 = vsel %vm1119, %v1252, 0
        %v1283 = vsel %vm1262, %v1256, 0
        %1285 = vmatpush.bf16.msra.mxu0 0
        %1286 = vmatpush.bf16.msra.mxu0 0
        %1287 = vmatpush.bf16.msra.mxu0 0
        %1288 = vmatpush.bf16.msra.mxu0 0
        %1289 = vmatpush.bf16.msra.mxu0 0
        %1290 = vmatpush.bf16.msra.mxu0 0
        %1291 = vmatpush.bf16.msra.mxu0 0
        %1292 = vmatpush.bf16.msra.mxu0 %v1283
        %1293 = vmatmul.bf16.gmra.mxu0 %v1280
        %v1294 = vpop.f32.mrf.mxu0
        %v1295 = vadd.f32 0.0, %v1294
        %v1296 = vpop.f32.mrf.mxu0
        %1297 = vdwg.mxu0
        %v1299 = vsel %vm1119, %v1253, 0
        %v1302 = vsel %vm1262, %v1257, 0
        %1304 = vmatpush.bf16.msra.mxu0 0
        %1305 = vmatpush.bf16.msra.mxu0 0
        %1306 = vmatpush.bf16.msra.mxu0 0
        %1307 = vmatpush.bf16.msra.mxu0 0
        %1308 = vmatpush.bf16.msra.mxu0 0
        %1309 = vmatpush.bf16.msra.mxu0 0
        %1310 = vmatpush.bf16.msra.mxu0 0
        %1311 = vmatpush.bf16.msra.mxu0 %v1302
        %1312 = vmatmul.bf16.gmra.mxu0 %v1299
        %v1313 = vpop.f32.mrf.mxu0
        %v1314 = vadd.f32 0.0, %v1313
        %v1315 = vpop.f32.mrf.mxu0
        %1316 = vdwg.mxu0
        %v1318 = vsel %vm1119, %v1254, 0
        %v1321 = vsel %vm1262, %v1258, 0
        %1323 = vmatpush.bf16.msra.mxu0 0
        %1324 = vmatpush.bf16.msra.mxu0 0
        %1325 = vmatpush.bf16.msra.mxu0 0
        %1326 = vmatpush.bf16.msra.mxu0 0
        %1327 = vmatpush.bf16.msra.mxu0 0
        %1328 = vmatpush.bf16.msra.mxu0 0
        %1329 = vmatpush.bf16.msra.mxu0 0
        %1330 = vmatpush.bf16.msra.mxu0 %v1321
        %1331 = vmatmul.bf16.gmra.mxu0 %v1318
        %v1332 = vpop.f32.mrf.mxu0
        %v1333 = vadd.f32 0.0, %v1332
        %v1334 = vpop.f32.mrf.mxu0
        %1335 = vdwg.mxu0
        %v1336 = vpack.c.bf16 %v1276, %v1276
        %v1337 = vpack.c.bf16 %v1295, %v1295
        %v1338 = vpack.c.bf16 %v1314, %v1314
        %v1339 = vpack.c.bf16 %v1333, %v1333
        %v1341 = vsel %vm1119, %v1336, 0
        %v1344 = vsel %vm1262, %v800, 0
        %1346 = vmatpush.bf16.msra.mxu0 0
        %1347 = vmatpush.bf16.msra.mxu0 0
        %1348 = vmatpush.bf16.msra.mxu0 0
        %1349 = vmatpush.bf16.msra.mxu0 0
        %1350 = vmatpush.bf16.msra.mxu0 0
        %1351 = vmatpush.bf16.msra.mxu0 0
        %1352 = vmatpush.bf16.msra.mxu0 0
        %1353 = vmatpush.bf16.msra.mxu0 %v1344
        %1354 = vmatmul.bf16.gmra.mxu0 %v1341
        %v1355 = vpop.f32.mrf.mxu0
        %v1356 = vadd.f32 0.0, %v1355
        %v1357 = vpop.f32.mrf.mxu0
        %1358 = vdwg.mxu0
        %v1360 = vsel %vm1119, %v1337, 0
        %v1363 = vsel %vm1262, %v801, 0
        %1365 = vmatpush.bf16.msra.mxu0 0
        %1366 = vmatpush.bf16.msra.mxu0 0
        %1367 = vmatpush.bf16.msra.mxu0 0
        %1368 = vmatpush.bf16.msra.mxu0 0
        %1369 = vmatpush.bf16.msra.mxu0 0
        %1370 = vmatpush.bf16.msra.mxu0 0
        %1371 = vmatpush.bf16.msra.mxu0 0
        %1372 = vmatpush.bf16.msra.mxu0 %v1363
        %1373 = vmatmul.bf16.gmra.mxu0 %v1360
        %v1374 = vpop.f32.mrf.mxu0
        %v1375 = vadd.f32 0.0, %v1374
        %v1376 = vpop.f32.mrf.mxu0
        %1377 = vdwg.mxu0
        %v1379 = vsel %vm1119, %v1338, 0
        %v1382 = vsel %vm1262, %v802, 0
        %1384 = vmatpush.bf16.msra.mxu0 0
        %1385 = vmatpush.bf16.msra.mxu0 0
        %1386 = vmatpush.bf16.msra.mxu0 0
        %1387 = vmatpush.bf16.msra.mxu0 0
        %1388 = vmatpush.bf16.msra.mxu0 0
        %1389 = vmatpush.bf16.msra.mxu0 0
        %1390 = vmatpush.bf16.msra.mxu0 0
        %1391 = vmatpush.bf16.msra.mxu0 %v1382
        %1392 = vmatmul.bf16.gmra.mxu0 %v1379
        %v1393 = vpop.f32.mrf.mxu0
        %v1394 = vadd.f32 0.0, %v1393
        %v1395 = vpop.f32.mrf.mxu0
        %1396 = vdwg.mxu0
        %v1398 = vsel %vm1119, %v1339, 0
        %v1401 = vsel %vm1262, %v803, 0
        %1403 = vmatpush.bf16.msra.mxu0 0
        %1404 = vmatpush.bf16.msra.mxu0 0
        %1405 = vmatpush.bf16.msra.mxu0 0
        %1406 = vmatpush.bf16.msra.mxu0 0
        %1407 = vmatpush.bf16.msra.mxu0 0
        %1408 = vmatpush.bf16.msra.mxu0 0
        %1409 = vmatpush.bf16.msra.mxu0 0
        %1410 = vmatpush.bf16.msra.mxu0 %v1401
        %1411 = vmatmul.bf16.gmra.mxu0 %v1398
        %v1412 = vpop.f32.mrf.mxu0
        %v1413 = vadd.f32 0.0, %v1412
        %v1414 = vpop.f32.mrf.mxu0
        %1415 = vdwg.mxu0
        %v1416 = vsel %vm819, %v1356, 0.0
        %v1417 = vsel %vm819, %v1375, 0.0
        %v1418 = vadd.f32 %v1416, %v1417
        %v1419 = vsel %vm819, %v1394, 0.0
        %v1420 = vadd.f32 %v1418, %v1419
        %v1421 = vsel %vm819, %v1413, 0.0
        %v1422 = vadd.f32 %v1420, %v1421
        %v1423 = vadd.f32 %v1422, %v749
        %v1424 = vsel %vm819, %v1423, 0.0
        %1425 = vadd.xlane.f32.xlu0 %v1424
        %v1426 = vpop.xlane.xlu0 %1425
        %v1427 = vrcp.pop 32.0
        %v1428 = vmul.f32 32.0, %v1427
        %v1429 = vsub.f32 1.0, %v1428
        %v1430 = vmul.f32 %v1427, %v1429
        %v1431 = vadd.f32 %v1427, %v1430
        %vm1432 = vweird.f32 %v1427
        %v1433 = vsel %vm1432, %v1427, %v1431
        %v1434 = vmul.f32 %v1426, %v1433
        %v1435 = vsub.f32 %v1423, %v1434
        %v1436 = vmul.f32 %v1435, %v1435
        %v1437 = vsel %vm819, %v1436, 0.0
        %1438 = vadd.xlane.f32.xlu0 %v1437
        %v1439 = vpop.xlane.xlu0 %1438
        %v1440 = vmul.f32 %v1439, %v1433
        %v1441 = vadd.f32 %v1440, 1e-05
        %v1442 = vrsqrt.pop %v1441
        %v1443 = vmul.f32 %v1442, %v1441
        %v1444 = vmul.f32 %v1443, %v1442
        %v1445 = vmul.f32 0.5, %v1444
        %v1446 = vsub.f32 1.5, %v1445
        %v1447 = vmul.f32 %v1442, %v1446
        %vm1448 = vweird.f32 %v1441
        %vm1449 = vweird.f32 %v1442
        %vm1450 = vmor %vm1448, %vm1449
        %v1451 = vsel %vm1450, %v1442, %v1447
        %v1452 = vmul.f32 %v1435, %v1451
        %v1454 = vperm.slane %v804, 0
        %v1456 = vmul.f32 %v1452, %v1454
        %v1458 = vperm.slane %v805, 0
        %v1460 = vadd.f32 %v1456, %v1458
        %1461 = vst.msk [vmem:[%s724] sm:$0xff] %vm1119, %v1247
        %1462 = vst.msk [vmem:[%s724 + $0x8] sm:$0xff] %vm1119, %v1248
        %1463 = vst.msk [vmem:[%s724 + $0x10] sm:$0xff] %vm1119, %v1249
        %1464 = vst.msk [vmem:[%s724 + $0x18] sm:$0xff] %vm1119, %v1250
        %v1465 = vld [vmem:[%s747] sm:$0xff]
        %v1466 = vld [vmem:[%s10] sm:$0xf]
        %v1467 = vld [vmem:[%s10 + $0x4] sm:$0xf]
        %v1468 = vld [vmem:[%s10 + $0x8] sm:$0xf]
        %v1469 = vld [vmem:[%s10 + $0xc] sm:$0xf]
        %v1470 = vld [vmem:[%s10 + $0x10] sm:$0xf]
        %v1471 = vld [vmem:[%s10 + $0x14] sm:$0xf]
        %v1472 = vld [vmem:[%s10 + $0x18] sm:$0xf]
        %v1473 = vld [vmem:[%s10 + $0x1c] sm:$0xf]
        %v1474 = vld [vmem:[%s10 + $0x20] sm:$0xf]
        %v1475 = vld [vmem:[%s10 + $0x24] sm:$0xf]
        %v1476 = vld [vmem:[%s10 + $0x28] sm:$0xf]
        %v1477 = vld [vmem:[%s10 + $0x2c] sm:$0xf]
        %v1478 = vld [vmem:[%s10 + $0x30] sm:$0xf]
        %v1479 = vld [vmem:[%s10 + $0x34] sm:$0xf]
        %v1480 = vld [vmem:[%s10 + $0x38] sm:$0xf]
        %v1481 = vld [vmem:[%s10 + $0x3c] sm:$0xf]
        %v1482 = vld [vmem:[%s11] sm:$0xf]
        %v1483 = vld [vmem:[%s11 + $0x4] sm:$0xf]
        %v1484 = vld [vmem:[%s11 + $0x8] sm:$0xf]
        %v1485 = vld [vmem:[%s11 + $0xc] sm:$0xf]
        %v1486 = vld [vmem:[%s11 + $0x10] sm:$0xf]
        %v1487 = vld [vmem:[%s11 + $0x14] sm:$0xf]
        %v1488 = vld [vmem:[%s11 + $0x18] sm:$0xf]
        %v1489 = vld [vmem:[%s11 + $0x1c] sm:$0xf]
        %v1490 = vld [vmem:[%s11 + $0x20] sm:$0xf]
        %v1491 = vld [vmem:[%s11 + $0x24] sm:$0xf]
        %v1492 = vld [vmem:[%s11 + $0x28] sm:$0xf]
        %v1493 = vld [vmem:[%s11 + $0x2c] sm:$0xf]
        %v1494 = vld [vmem:[%s11 + $0x30] sm:$0xf]
        %v1495 = vld [vmem:[%s11 + $0x34] sm:$0xf]
        %v1496 = vld [vmem:[%s11 + $0x38] sm:$0xf]
        %v1497 = vld [vmem:[%s11 + $0x3c] sm:$0xf]
        %v1498 = vld [vmem:[%s12] sm:$0xf]
        %v1499 = vld [vmem:[%s12 + $0x4] sm:$0xf]
        %v1500 = vld [vmem:[%s12 + $0x8] sm:$0xf]
        %v1501 = vld [vmem:[%s12 + $0xc] sm:$0xf]
        %v1502 = vld [vmem:[%s12 + $0x10] sm:$0xf]
        %v1503 = vld [vmem:[%s12 + $0x14] sm:$0xf]
        %v1504 = vld [vmem:[%s12 + $0x18] sm:$0xf]
        %v1505 = vld [vmem:[%s12 + $0x1c] sm:$0xf]
        %v1506 = vld [vmem:[%s12 + $0x20] sm:$0xf]
        %v1507 = vld [vmem:[%s12 + $0x24] sm:$0xf]
        %v1508 = vld [vmem:[%s12 + $0x28] sm:$0xf]
        %v1509 = vld [vmem:[%s12 + $0x2c] sm:$0xf]
        %v1510 = vld [vmem:[%s12 + $0x30] sm:$0xf]
        %v1511 = vld [vmem:[%s12 + $0x34] sm:$0xf]
        %v1512 = vld [vmem:[%s12 + $0x38] sm:$0xf]
        %v1513 = vld [vmem:[%s12 + $0x3c] sm:$0xf]
        %v1514 = vld [vmem:[%s13] sm:$0xf]
        %v1515 = vld [vmem:[%s13 + $0x4] sm:$0xf]
        %v1516 = vld [vmem:[%s13 + $0x8] sm:$0xf]
        %v1517 = vld [vmem:[%s13 + $0xc] sm:$0xf]
        %v1518 = vld [vmem:[%s14] sm:$0x1]
        %v1519 = vld [vmem:[%s15] sm:$0x1]
        %v1520 = vpack.c.bf16 %v1460, %v1460
        %v1521 = vpack.c.bf16 %v750, %v750
        %v1526 = vunpack.c.l.b16 %v1466
        %v1527 = vunpack.c.l.b16 %v1467
        %v1528 = vunpack.c.l.b16 %v1468
        %v1529 = vunpack.c.l.b16 %v1469
        %v1530 = vpack.c.b16 %v1527, %v1526
        %v1531 = vpack.c.b16 %v1529, %v1528
        %v1535 = vsel %vm819, %v1520, 0
        %1537 = vmatpush.bf16.msra.mxu0 0
        %1538 = vmatpush.bf16.msra.mxu0 0
        %1539 = vmatpush.bf16.msra.mxu0 0
        %1540 = vmatpush.bf16.msra.mxu0 0
        %1541 = vmatpush.bf16.msra.mxu0 0
        %1542 = vmatpush.bf16.msra.mxu0 0
        %1543 = vmatpush.bf16.msra.mxu0 %v1531
        %1544 = vmatpush.bf16.msra.mxu0 %v1530
        %1545 = vmatmul.bf16.gmra.mxu0 %v1535
        %v1546 = vpop.f32.mrf.mxu0
        %v1547 = vadd.f32 0.0, %v1546
        %v1548 = vpop.f32.mrf.mxu0
        %1549 = vdwg.mxu0
        %v1554 = vunpack.c.l.b16 %v1470
        %v1555 = vunpack.c.l.b16 %v1471
        %v1556 = vunpack.c.l.b16 %v1472
        %v1557 = vunpack.c.l.b16 %v1473
        %v1558 = vpack.c.b16 %v1555, %v1554
        %v1559 = vpack.c.b16 %v1557, %v1556
        %1562 = vmatpush.bf16.msra.mxu0 0
        %1563 = vmatpush.bf16.msra.mxu0 0
        %1564 = vmatpush.bf16.msra.mxu0 0
        %1565 = vmatpush.bf16.msra.mxu0 0
        %1566 = vmatpush.bf16.msra.mxu0 0
        %1567 = vmatpush.bf16.msra.mxu0 0
        %1568 = vmatpush.bf16.msra.mxu0 %v1559
        %1569 = vmatpush.bf16.msra.mxu0 %v1558
        %1570 = vmatmul.bf16.gmra.mxu0 %v1535
        %v1571 = vpop.f32.mrf.mxu0
        %v1572 = vadd.f32 0.0, %v1571
        %v1573 = vpop.f32.mrf.mxu0
        %1574 = vdwg.mxu0
        %v1579 = vunpack.c.l.b16 %v1474
        %v1580 = vunpack.c.l.b16 %v1475
        %v1581 = vunpack.c.l.b16 %v1476
        %v1582 = vunpack.c.l.b16 %v1477
        %v1583 = vpack.c.b16 %v1580, %v1579
        %v1584 = vpack.c.b16 %v1582, %v1581
        %1587 = vmatpush.bf16.msra.mxu0 0
        %1588 = vmatpush.bf16.msra.mxu0 0
        %1589 = vmatpush.bf16.msra.mxu0 0
        %1590 = vmatpush.bf16.msra.mxu0 0
        %1591 = vmatpush.bf16.msra.mxu0 0
        %1592 = vmatpush.bf16.msra.mxu0 0
        %1593 = vmatpush.bf16.msra.mxu0 %v1584
        %1594 = vmatpush.bf16.msra.mxu0 %v1583
        %1595 = vmatmul.bf16.gmra.mxu0 %v1535
        %v1596 = vpop.f32.mrf.mxu0
        %v1597 = vadd.f32 0.0, %v1596
        %v1598 = vpop.f32.mrf.mxu0
        %1599 = vdwg.mxu0
        %v1604 = vunpack.c.l.b16 %v1478
        %v1605 = vunpack.c.l.b16 %v1479
        %v1606 = vunpack.c.l.b16 %v1480
        %v1607 = vunpack.c.l.b16 %v1481
        %v1608 = vpack.c.b16 %v1605, %v1604
        %v1609 = vpack.c.b16 %v1607, %v1606
        %1612 = vmatpush.bf16.msra.mxu0 0
        %1613 = vmatpush.bf16.msra.mxu0 0
        %1614 = vmatpush.bf16.msra.mxu0 0
        %1615 = vmatpush.bf16.msra.mxu0 0
        %1616 = vmatpush.bf16.msra.mxu0 0
        %1617 = vmatpush.bf16.msra.mxu0 0
        %1618 = vmatpush.bf16.msra.mxu0 %v1609
        %1619 = vmatpush.bf16.msra.mxu0 %v1608
        %1620 = vmatmul.bf16.gmra.mxu0 %v1535
        %v1621 = vpop.f32.mrf.mxu0
        %v1622 = vadd.f32 0.0, %v1621
        %v1623 = vpop.f32.mrf.mxu0
        %1624 = vdwg.mxu0
        %v1629 = vunpack.c.l.b16 %v1482
        %v1630 = vunpack.c.l.b16 %v1483
        %v1631 = vunpack.c.l.b16 %v1484
        %v1632 = vunpack.c.l.b16 %v1485
        %v1633 = vpack.c.b16 %v1630, %v1629
        %v1634 = vpack.c.b16 %v1632, %v1631
        %v1638 = vsel %vm819, %v1521, 0
        %1640 = vmatpush.bf16.msra.mxu0 0
        %1641 = vmatpush.bf16.msra.mxu0 0
        %1642 = vmatpush.bf16.msra.mxu0 0
        %1643 = vmatpush.bf16.msra.mxu0 0
        %1644 = vmatpush.bf16.msra.mxu0 0
        %1645 = vmatpush.bf16.msra.mxu0 0
        %1646 = vmatpush.bf16.msra.mxu0 %v1634
        %1647 = vmatpush.bf16.msra.mxu0 %v1633
        %1648 = vmatmul.bf16.gmra.mxu0 %v1638
        %v1649 = vpop.f32.mrf.mxu0
        %v1650 = vadd.f32 0.0, %v1649
        %v1651 = vpop.f32.mrf.mxu0
        %1652 = vdwg.mxu0
        %v1657 = vunpack.c.l.b16 %v1486
        %v1658 = vunpack.c.l.b16 %v1487
        %v1659 = vunpack.c.l.b16 %v1488
        %v1660 = vunpack.c.l.b16 %v1489
        %v1661 = vpack.c.b16 %v1658, %v1657
        %v1662 = vpack.c.b16 %v1660, %v1659
        %1665 = vmatpush.bf16.msra.mxu0 0
        %1666 = vmatpush.bf16.msra.mxu0 0
        %1667 = vmatpush.bf16.msra.mxu0 0
        %1668 = vmatpush.bf16.msra.mxu0 0
        %1669 = vmatpush.bf16.msra.mxu0 0
        %1670 = vmatpush.bf16.msra.mxu0 0
        %1671 = vmatpush.bf16.msra.mxu0 %v1662
        %1672 = vmatpush.bf16.msra.mxu0 %v1661
        %1673 = vmatmul.bf16.gmra.mxu0 %v1638
        %v1674 = vpop.f32.mrf.mxu0
        %v1675 = vadd.f32 0.0, %v1674
        %v1676 = vpop.f32.mrf.mxu0
        %1677 = vdwg.mxu0
        %v1682 = vunpack.c.l.b16 %v1490
        %v1683 = vunpack.c.l.b16 %v1491
        %v1684 = vunpack.c.l.b16 %v1492
        %v1685 = vunpack.c.l.b16 %v1493
        %v1686 = vpack.c.b16 %v1683, %v1682
        %v1687 = vpack.c.b16 %v1685, %v1684
        %1690 = vmatpush.bf16.msra.mxu0 0
        %1691 = vmatpush.bf16.msra.mxu0 0
        %1692 = vmatpush.bf16.msra.mxu0 0
        %1693 = vmatpush.bf16.msra.mxu0 0
        %1694 = vmatpush.bf16.msra.mxu0 0
        %1695 = vmatpush.bf16.msra.mxu0 0
        %1696 = vmatpush.bf16.msra.mxu0 %v1687
        %1697 = vmatpush.bf16.msra.mxu0 %v1686
        %1698 = vmatmul.bf16.gmra.mxu0 %v1638
        %v1699 = vpop.f32.mrf.mxu0
        %v1700 = vadd.f32 0.0, %v1699
        %v1701 = vpop.f32.mrf.mxu0
        %1702 = vdwg.mxu0
        %v1707 = vunpack.c.l.b16 %v1494
        %v1708 = vunpack.c.l.b16 %v1495
        %v1709 = vunpack.c.l.b16 %v1496
        %v1710 = vunpack.c.l.b16 %v1497
        %v1711 = vpack.c.b16 %v1708, %v1707
        %v1712 = vpack.c.b16 %v1710, %v1709
        %1715 = vmatpush.bf16.msra.mxu0 0
        %1716 = vmatpush.bf16.msra.mxu0 0
        %1717 = vmatpush.bf16.msra.mxu0 0
        %1718 = vmatpush.bf16.msra.mxu0 0
        %1719 = vmatpush.bf16.msra.mxu0 0
        %1720 = vmatpush.bf16.msra.mxu0 0
        %1721 = vmatpush.bf16.msra.mxu0 %v1712
        %1722 = vmatpush.bf16.msra.mxu0 %v1711
        %1723 = vmatmul.bf16.gmra.mxu0 %v1638
        %v1724 = vpop.f32.mrf.mxu0
        %v1725 = vadd.f32 0.0, %v1724
        %v1726 = vpop.f32.mrf.mxu0
        %1727 = vdwg.mxu0
        %v1732 = vunpack.c.l.b16 %v1498
        %v1733 = vunpack.c.l.b16 %v1499
        %v1734 = vunpack.c.l.b16 %v1500
        %v1735 = vunpack.c.l.b16 %v1501
        %v1736 = vpack.c.b16 %v1733, %v1732
        %v1737 = vpack.c.b16 %v1735, %v1734
        %1740 = vmatpush.bf16.msra.mxu0 0
        %1741 = vmatpush.bf16.msra.mxu0 0
        %1742 = vmatpush.bf16.msra.mxu0 0
        %1743 = vmatpush.bf16.msra.mxu0 0
        %1744 = vmatpush.bf16.msra.mxu0 0
        %1745 = vmatpush.bf16.msra.mxu0 0
        %1746 = vmatpush.bf16.msra.mxu0 %v1737
        %1747 = vmatpush.bf16.msra.mxu0 %v1736
        %1748 = vmatmul.bf16.gmra.mxu0 %v1638
        %v1749 = vpop.f32.mrf.mxu0
        %v1750 = vadd.f32 0.0, %v1749
        %v1751 = vpop.f32.mrf.mxu0
        %1752 = vdwg.mxu0
        %v1757 = vunpack.c.l.b16 %v1502
        %v1758 = vunpack.c.l.b16 %v1503
        %v1759 = vunpack.c.l.b16 %v1504
        %v1760 = vunpack.c.l.b16 %v1505
        %v1761 = vpack.c.b16 %v1758, %v1757
        %v1762 = vpack.c.b16 %v1760, %v1759
        %1765 = vmatpush.bf16.msra.mxu0 0
        %1766 = vmatpush.bf16.msra.mxu0 0
        %1767 = vmatpush.bf16.msra.mxu0 0
        %1768 = vmatpush.bf16.msra.mxu0 0
        %1769 = vmatpush.bf16.msra.mxu0 0
        %1770 = vmatpush.bf16.msra.mxu0 0
        %1771 = vmatpush.bf16.msra.mxu0 %v1762
        %1772 = vmatpush.bf16.msra.mxu0 %v1761
        %1773 = vmatmul.bf16.gmra.mxu0 %v1638
        %v1774 = vpop.f32.mrf.mxu0
        %v1775 = vadd.f32 0.0, %v1774
        %v1776 = vpop.f32.mrf.mxu0
        %1777 = vdwg.mxu0
        %v1782 = vunpack.c.l.b16 %v1506
        %v1783 = vunpack.c.l.b16 %v1507
        %v1784 = vunpack.c.l.b16 %v1508
        %v1785 = vunpack.c.l.b16 %v1509
        %v1786 = vpack.c.b16 %v1783, %v1782
        %v1787 = vpack.c.b16 %v1785, %v1784
        %1790 = vmatpush.bf16.msra.mxu0 0
        %1791 = vmatpush.bf16.msra.mxu0 0
        %1792 = vmatpush.bf16.msra.mxu0 0
        %1793 = vmatpush.bf16.msra.mxu0 0
        %1794 = vmatpush.bf16.msra.mxu0 0
        %1795 = vmatpush.bf16.msra.mxu0 0
        %1796 = vmatpush.bf16.msra.mxu0 %v1787
        %1797 = vmatpush.bf16.msra.mxu0 %v1786
        %1798 = vmatmul.bf16.gmra.mxu0 %v1638
        %v1799 = vpop.f32.mrf.mxu0
        %v1800 = vadd.f32 0.0, %v1799
        %v1801 = vpop.f32.mrf.mxu0
        %1802 = vdwg.mxu0
        %v1807 = vunpack.c.l.b16 %v1510
        %v1808 = vunpack.c.l.b16 %v1511
        %v1809 = vunpack.c.l.b16 %v1512
        %v1810 = vunpack.c.l.b16 %v1513
        %v1811 = vpack.c.b16 %v1808, %v1807
        %v1812 = vpack.c.b16 %v1810, %v1809
        %1815 = vmatpush.bf16.msra.mxu0 0
        %1816 = vmatpush.bf16.msra.mxu0 0
        %1817 = vmatpush.bf16.msra.mxu0 0
        %1818 = vmatpush.bf16.msra.mxu0 0
        %1819 = vmatpush.bf16.msra.mxu0 0
        %1820 = vmatpush.bf16.msra.mxu0 0
        %1821 = vmatpush.bf16.msra.mxu0 %v1812
        %1822 = vmatpush.bf16.msra.mxu0 %v1811
        %1823 = vmatmul.bf16.gmra.mxu0 %v1638
        %v1824 = vpop.f32.mrf.mxu0
        %v1825 = vadd.f32 0.0, %v1824
        %v1826 = vpop.f32.mrf.mxu0
        %1827 = vdwg.mxu0
        %v1828 = vpack.c.bf16 %v1547, %v1547
        %v1829 = vpack.c.bf16 %v1572, %v1572
        %v1830 = vpack.c.bf16 %v1597, %v1597
        %v1831 = vpack.c.bf16 %v1622, %v1622
        %v1832 = vpack.c.bf16 %v1650, %v1650
        %v1833 = vpack.c.bf16 %v1675, %v1675
        %v1834 = vpack.c.bf16 %v1700, %v1700
        %v1835 = vpack.c.bf16 %v1725, %v1725
        %v1837 = vsel %vm1119, %v1828, 0
        %v1840 = vsel %vm1119, %v1832, 0
        %1842 = vmatpush.bf16.xpose.msra.mxu0 0
        %1843 = vmatpush.bf16.xpose.msra.mxu0 0
        %1844 = vmatpush.bf16.xpose.msra.mxu0 0
        %1845 = vmatpush.bf16.xpose.msra.mxu0 0
        %1846 = vmatpush.bf16.xpose.msra.mxu0 0
        %1847 = vmatpush.bf16.xpose.msra.mxu0 0
        %1848 = vmatpush.bf16.xpose.msra.mxu0 0
        %1849 = vmatpush.bf16.xpose.msra.mxu0 %v1840
        %1850 = vmatmul.bf16.gmra.mxu0 %v1837
        %v1851 = vpop.f32.mrf.mxu0
        %v1852 = vadd.f32 0.0, %v1851
        %v1853 = vpop.f32.mrf.mxu0
        %1854 = vdwg.mxu0
        %v1856 = vsel %vm1119, %v1829, 0
        %v1859 = vsel %vm1119, %v1833, 0
        %1861 = vmatpush.bf16.xpose.msra.mxu0 0
        %1862 = vmatpush.bf16.xpose.msra.mxu0 0
        %1863 = vmatpush.bf16.xpose.msra.mxu0 0
        %1864 = vmatpush.bf16.xpose.msra.mxu0 0
        %1865 = vmatpush.bf16.xpose.msra.mxu0 0
        %1866 = vmatpush.bf16.xpose.msra.mxu0 0
        %1867 = vmatpush.bf16.xpose.msra.mxu0 0
        %1868 = vmatpush.bf16.xpose.msra.mxu0 %v1859
        %1869 = vmatmul.bf16.gmra.mxu0 %v1856
        %v1870 = vpop.f32.mrf.mxu0
        %v1871 = vadd.f32 0.0, %v1870
        %v1872 = vpop.f32.mrf.mxu0
        %1873 = vdwg.mxu0
        %v1875 = vsel %vm1119, %v1830, 0
        %v1878 = vsel %vm1119, %v1834, 0
        %1880 = vmatpush.bf16.xpose.msra.mxu0 0
        %1881 = vmatpush.bf16.xpose.msra.mxu0 0
        %1882 = vmatpush.bf16.xpose.msra.mxu0 0
        %1883 = vmatpush.bf16.xpose.msra.mxu0 0
        %1884 = vmatpush.bf16.xpose.msra.mxu0 0
        %1885 = vmatpush.bf16.xpose.msra.mxu0 0
        %1886 = vmatpush.bf16.xpose.msra.mxu0 0
        %1887 = vmatpush.bf16.xpose.msra.mxu0 %v1878
        %1888 = vmatmul.bf16.gmra.mxu0 %v1875
        %v1889 = vpop.f32.mrf.mxu0
        %v1890 = vadd.f32 0.0, %v1889
        %v1891 = vpop.f32.mrf.mxu0
        %1892 = vdwg.mxu0
        %v1894 = vsel %vm1119, %v1831, 0
        %v1897 = vsel %vm1119, %v1835, 0
        %1899 = vmatpush.bf16.xpose.msra.mxu0 0
        %1900 = vmatpush.bf16.xpose.msra.mxu0 0
        %1901 = vmatpush.bf16.xpose.msra.mxu0 0
        %1902 = vmatpush.bf16.xpose.msra.mxu0 0
        %1903 = vmatpush.bf16.xpose.msra.mxu0 0
        %1904 = vmatpush.bf16.xpose.msra.mxu0 0
        %1905 = vmatpush.bf16.xpose.msra.mxu0 0
        %1906 = vmatpush.bf16.xpose.msra.mxu0 %v1897
        %1907 = vmatmul.bf16.gmra.mxu0 %v1894
        %v1908 = vpop.f32.mrf.mxu0
        %v1909 = vadd.f32 0.0, %v1908
        %v1910 = vpop.f32.mrf.mxu0
        %1911 = vdwg.mxu0
        %v1912 = vmul.f32 %v1852, 0.35355338
        %v1913 = vmul.f32 %v1871, 0.35355338
        %v1914 = vmul.f32 %v1890, 0.35355338
        %v1915 = vmul.f32 %v1909, 0.35355338
        %vm1916 = vcmp.gt.f32.partialorder %v1465, 0.0
        %v1917 = vsel %vm1916, 1, 0
        %vm1918 = vcmp.eq.s32.totalorder %v1917, 1
        %v1919 = vsel %vm1918, -1e+09, %v1912
        %v1920 = vsel %vm1918, -1e+09, %v1913
        %v1921 = vsel %vm1918, -1e+09, %v1914
        %v1922 = vsel %vm1918, -1e+09, %v1915
        %v1923 = vsel %vm1119, %v1919, -inf
        %1924 = vmax.xlane.f32.xlu0 %v1923
        %v1925 = vpop.xlane.xlu0 %1924
        %v1926 = vsel %vm1119, %v1920, -inf
        %1927 = vmax.xlane.f32.xlu0 %v1926
        %v1928 = vpop.xlane.xlu0 %1927
        %v1929 = vsel %vm1119, %v1921, -inf
        %1930 = vmax.xlane.f32.xlu0 %v1929
        %v1931 = vpop.xlane.xlu0 %1930
        %v1932 = vsel %vm1119, %v1922, -inf
        %1933 = vmax.xlane.f32.xlu0 %v1932
        %v1934 = vpop.xlane.xlu0 %1933
        %v1935 = vsub.f32 %v1919, %v1925
        %v1936 = vsub.f32 %v1920, %v1928
        %v1937 = vsub.f32 %v1921, %v1931
        %v1938 = vsub.f32 %v1922, %v1934
        %v1939 = vmul.f32 %v1935, 1.442695
        %v1940 = vpow.pop %v1939
        %v1941 = vmul.f32 %v1936, 1.442695
        %v1942 = vpow.pop %v1941
        %v1943 = vmul.f32 %v1937, 1.442695
        %v1944 = vpow.pop %v1943
        %v1945 = vmul.f32 %v1938, 1.442695
        %v1946 = vpow.pop %v1945
        %v1947 = vsel %vm1119, %v1940, 0.0
        %1948 = vadd.xlane.f32.xlu0 %v1947
        %v1949 = vpop.xlane.xlu0 %1948
        %v1950 = vsel %vm1119, %v1942, 0.0
        %1951 = vadd.xlane.f32.xlu0 %v1950
        %v1952 = vpop.xlane.xlu0 %1951
        %v1953 = vsel %vm1119, %v1944, 0.0
        %1954 = vadd.xlane.f32.xlu0 %v1953
        %v1955 = vpop.xlane.xlu0 %1954
        %v1956 = vsel %vm1119, %v1946, 0.0
        %1957 = vadd.xlane.f32.xlu0 %v1956
        %v1958 = vpop.xlane.xlu0 %1957
        %v1959 = vrcp.pop %v1949
        %v1960 = vrcp.pop %v1952
        %v1961 = vrcp.pop %v1955
        %v1962 = vrcp.pop %v1958
        %v1963 = vmul.f32 %v1940, %v1959
        %v1964 = vmul.f32 %v1942, %v1960
        %v1965 = vmul.f32 %v1944, %v1961
        %v1966 = vmul.f32 %v1946, %v1962
        %v1967 = vpack.c.bf16 %v1963, %v1963
        %v1968 = vpack.c.bf16 %v1964, %v1964
        %v1969 = vpack.c.bf16 %v1965, %v1965
        %v1970 = vpack.c.bf16 %v1966, %v1966
        %v1971 = vpack.c.bf16 %v1750, %v1750
        %v1972 = vpack.c.bf16 %v1775, %v1775
        %v1973 = vpack.c.bf16 %v1800, %v1800
        %v1974 = vpack.c.bf16 %v1825, %v1825
        %v1976 = vsel %vm1119, %v1967, 0
        %v1979 = vsel %vm1262, %v1971, 0
        %1981 = vmatpush.bf16.msra.mxu0 0
        %1982 = vmatpush.bf16.msra.mxu0 0
        %1983 = vmatpush.bf16.msra.mxu0 0
        %1984 = vmatpush.bf16.msra.mxu0 0
        %1985 = vmatpush.bf16.msra.mxu0 0
        %1986 = vmatpush.bf16.msra.mxu0 0
        %1987 = vmatpush.bf16.msra.mxu0 0
        %1988 = vmatpush.bf16.msra.mxu0 %v1979
        %1989 = vmatmul.bf16.gmra.mxu0 %v1976
        %v1990 = vpop.f32.mrf.mxu0
        %v1991 = vadd.f32 0.0, %v1990
        %v1992 = vpop.f32.mrf.mxu0
        %1993 = vdwg.mxu0
        %v1995 = vsel %vm1119, %v1968, 0
        %v1998 = vsel %vm1262, %v1972, 0
        %2000 = vmatpush.bf16.msra.mxu0 0
        %2001 = vmatpush.bf16.msra.mxu0 0
        %2002 = vmatpush.bf16.msra.mxu0 0
        %2003 = vmatpush.bf16.msra.mxu0 0
        %2004 = vmatpush.bf16.msra.mxu0 0
        %2005 = vmatpush.bf16.msra.mxu0 0
        %2006 = vmatpush.bf16.msra.mxu0 0
        %2007 = vmatpush.bf16.msra.mxu0 %v1998
        %2008 = vmatmul.bf16.gmra.mxu0 %v1995
        %v2009 = vpop.f32.mrf.mxu0
        %v2010 = vadd.f32 0.0, %v2009
        %v2011 = vpop.f32.mrf.mxu0
        %2012 = vdwg.mxu0
        %v2014 = vsel %vm1119, %v1969, 0
        %v2017 = vsel %vm1262, %v1973, 0
        %2019 = vmatpush.bf16.msra.mxu0 0
        %2020 = vmatpush.bf16.msra.mxu0 0
        %2021 = vmatpush.bf16.msra.mxu0 0
        %2022 = vmatpush.bf16.msra.mxu0 0
        %2023 = vmatpush.bf16.msra.mxu0 0
        %2024 = vmatpush.bf16.msra.mxu0 0
        %2025 = vmatpush.bf16.msra.mxu0 0
        %2026 = vmatpush.bf16.msra.mxu0 %v2017
        %2027 = vmatmul.bf16.gmra.mxu0 %v2014
        %v2028 = vpop.f32.mrf.mxu0
        %v2029 = vadd.f32 0.0, %v2028
        %v2030 = vpop.f32.mrf.mxu0
        %2031 = vdwg.mxu0
        %v2033 = vsel %vm1119, %v1970, 0
        %v2036 = vsel %vm1262, %v1974, 0
        %2038 = vmatpush.bf16.msra.mxu0 0
        %2039 = vmatpush.bf16.msra.mxu0 0
        %2040 = vmatpush.bf16.msra.mxu0 0
        %2041 = vmatpush.bf16.msra.mxu0 0
        %2042 = vmatpush.bf16.msra.mxu0 0
        %2043 = vmatpush.bf16.msra.mxu0 0
        %2044 = vmatpush.bf16.msra.mxu0 0
        %2045 = vmatpush.bf16.msra.mxu0 %v2036
        %2046 = vmatmul.bf16.gmra.mxu0 %v2033
        %v2047 = vpop.f32.mrf.mxu0
        %v2048 = vadd.f32 0.0, %v2047
        %v2049 = vpop.f32.mrf.mxu0
        %2050 = vdwg.mxu0
        %v2051 = vpack.c.bf16 %v1991, %v1991
        %v2052 = vpack.c.bf16 %v2010, %v2010
        %v2053 = vpack.c.bf16 %v2029, %v2029
        %v2054 = vpack.c.bf16 %v2048, %v2048
        %v2056 = vsel %vm1119, %v2051, 0
        %v2059 = vsel %vm1262, %v1514, 0
        %2061 = vmatpush.bf16.msra.mxu0 0
        %2062 = vmatpush.bf16.msra.mxu0 0
        %2063 = vmatpush.bf16.msra.mxu0 0
        %2064 = vmatpush.bf16.msra.mxu0 0
        %2065 = vmatpush.bf16.msra.mxu0 0
        %2066 = vmatpush.bf16.msra.mxu0 0
        %2067 = vmatpush.bf16.msra.mxu0 0
        %2068 = vmatpush.bf16.msra.mxu0 %v2059
        %2069 = vmatmul.bf16.gmra.mxu0 %v2056
        %v2070 = vpop.f32.mrf.mxu0
        %v2071 = vadd.f32 0.0, %v2070
        %v2072 = vpop.f32.mrf.mxu0
        %2073 = vdwg.mxu0
        %v2075 = vsel %vm1119, %v2052, 0
        %v2078 = vsel %vm1262, %v1515, 0
        %2080 = vmatpush.bf16.msra.mxu0 0
        %2081 = vmatpush.bf16.msra.mxu0 0
        %2082 = vmatpush.bf16.msra.mxu0 0
        %2083 = vmatpush.bf16.msra.mxu0 0
        %2084 = vmatpush.bf16.msra.mxu0 0
        %2085 = vmatpush.bf16.msra.mxu0 0
        %2086 = vmatpush.bf16.msra.mxu0 0
        %2087 = vmatpush.bf16.msra.mxu0 %v2078
        %2088 = vmatmul.bf16.gmra.mxu0 %v2075
        %v2089 = vpop.f32.mrf.mxu0
        %v2090 = vadd.f32 0.0, %v2089
        %v2091 = vpop.f32.mrf.mxu0
        %2092 = vdwg.mxu0
        %v2094 = vsel %vm1119, %v2053, 0
        %v2097 = vsel %vm1262, %v1516, 0
        %2099 = vmatpush.bf16.msra.mxu0 0
        %2100 = vmatpush.bf16.msra.mxu0 0
        %2101 = vmatpush.bf16.msra.mxu0 0
        %2102 = vmatpush.bf16.msra.mxu0 0
        %2103 = vmatpush.bf16.msra.mxu0 0
        %2104 = vmatpush.bf16.msra.mxu0 0
        %2105 = vmatpush.bf16.msra.mxu0 0
        %2106 = vmatpush.bf16.msra.mxu0 %v2097
        %2107 = vmatmul.bf16.gmra.mxu0 %v2094
        %v2108 = vpop.f32.mrf.mxu0
        %v2109 = vadd.f32 0.0, %v2108
        %v2110 = vpop.f32.mrf.mxu0
        %2111 = vdwg.mxu0
        %v2113 = vsel %vm1119, %v2054, 0
        %v2116 = vsel %vm1262, %v1517, 0
        %2118 = vmatpush.bf16.msra.mxu0 0
        %2119 = vmatpush.bf16.msra.mxu0 0
        %2120 = vmatpush.bf16.msra.mxu0 0
        %2121 = vmatpush.bf16.msra.mxu0 0
        %2122 = vmatpush.bf16.msra.mxu0 0
        %2123 = vmatpush.bf16.msra.mxu0 0
        %2124 = vmatpush.bf16.msra.mxu0 0
        %2125 = vmatpush.bf16.msra.mxu0 %v2116
        %2126 = vmatmul.bf16.gmra.mxu0 %v2113
        %v2127 = vpop.f32.mrf.mxu0
        %v2128 = vadd.f32 0.0, %v2127
        %v2129 = vpop.f32.mrf.mxu0
        %2130 = vdwg.mxu0
        %v2131 = vsel %vm819, %v2071, 0.0
        %v2132 = vsel %vm819, %v2090, 0.0
        %v2133 = vadd.f32 %v2131, %v2132
        %v2134 = vsel %vm819, %v2109, 0.0
        %v2135 = vadd.f32 %v2133, %v2134
        %v2136 = vsel %vm819, %v2128, 0.0
        %v2137 = vadd.f32 %v2135, %v2136
        %v2138 = vadd.f32 %v2137, %v1460
        %v2139 = vsel %vm819, %v2138, 0.0
        %2140 = vadd.xlane.f32.xlu0 %v2139
        %v2141 = vpop.xlane.xlu0 %2140
        %v2142 = vmul.f32 %v2141, %v1433
        %v2143 = vsub.f32 %v2138, %v2142
        %v2144 = vmul.f32 %v2143, %v2143
        %v2145 = vsel %vm819, %v2144, 0.0
        %2146 = vadd.xlane.f32.xlu0 %v2145
        %v2147 = vpop.xlane.xlu0 %2146
        %v2148 = vmul.f32 %v2147, %v1433
        %v2149 = vadd.f32 %v2148, 1e-05
        %v2150 = vrsqrt.pop %v2149
        %v2151 = vmul.f32 %v2150, %v2149
        %v2152 = vmul.f32 %v2151, %v2150
        %v2153 = vmul.f32 0.5, %v2152
        %v2154 = vsub.f32 1.5, %v2153
        %v2155 = vmul.f32 %v2150, %v2154
        %vm2156 = vweird.f32 %v2149
        %vm2157 = vweird.f32 %v2150
        %vm2158 = vmor %vm2156, %vm2157
        %v2159 = vsel %vm2158, %v2150, %v2155
        %v2160 = vmul.f32 %v2143, %v2159
        %v2162 = vperm.slane %v1518, 0
        %v2164 = vmul.f32 %v2160, %v2162
        %v2166 = vperm.slane %v1519, 0
        %v2168 = vadd.f32 %v2164, %v2166
        %2169 = vst.msk [vmem:[%s731] sm:$0xff] %vm1119, %v1963
        %2170 = vst.msk [vmem:[%s731 + $0x8] sm:$0xff] %vm1119, %v1964
        %2171 = vst.msk [vmem:[%s731 + $0x10] sm:$0xff] %vm1119, %v1965
        %2172 = vst.msk [vmem:[%s731 + $0x18] sm:$0xff] %vm1119, %v1966
        %v2173 = vpack.c.bf16 %v2168, %v2168
        %v2174 = vld [vmem:[%s16] sm:$0xf]
        %v2175 = vld [vmem:[%s16 + $0x4] sm:$0xf]
        %v2176 = vld [vmem:[%s16 + $0x8] sm:$0xf]
        %v2177 = vld [vmem:[%s16 + $0xc] sm:$0xf]
        %v2182 = vunpack.c.l.b16 %v2174
        %v2183 = vunpack.c.l.b16 %v2175
        %v2184 = vunpack.c.l.b16 %v2176
        %v2185 = vunpack.c.l.b16 %v2177
        %v2186 = vpack.c.b16 %v2183, %v2182
        %v2187 = vpack.c.b16 %v2185, %v2184
        %v2191 = vsel %vm819, %v2173, 0
        %2193 = vmatpush.bf16.msra.mxu0 0
        %2194 = vmatpush.bf16.msra.mxu0 0
        %2195 = vmatpush.bf16.msra.mxu0 0
        %2196 = vmatpush.bf16.msra.mxu0 0
        %2197 = vmatpush.bf16.msra.mxu0 0
        %2198 = vmatpush.bf16.msra.mxu0 0
        %2199 = vmatpush.bf16.msra.mxu0 %v2187
        %2200 = vmatpush.bf16.msra.mxu0 %v2186
        %2201 = vmatmul.bf16.gmra.mxu0 %v2191
        %v2202 = vpop.f32.mrf.mxu0
        %v2203 = vadd.f32 0.0, %v2202
        %v2204 = vpop.f32.mrf.mxu0
        %2205 = vdwg.mxu0
        %v2206 = vmax.f32 %v2203, 0.0
        %v2207 = vpack.c.bf16 %v2206, %v2206
        %v2208 = vld [vmem:[%s17] sm:$0xf]
        %v2209 = vld [vmem:[%s17 + $0x4] sm:$0xf]
        %v2210 = vld [vmem:[%s17 + $0x8] sm:$0xf]
        %v2211 = vld [vmem:[%s17 + $0xc] sm:$0xf]
        %v2212 = vld [vmem:[%s17 + $0x10] sm:$0xf]
        %v2213 = vld [vmem:[%s17 + $0x14] sm:$0xf]
        %v2214 = vld [vmem:[%s17 + $0x18] sm:$0xf]
        %v2215 = vld [vmem:[%s17 + $0x1c] sm:$0xf]
        %v2224 = vunpack.c.l.b16 %v2208
        %v2225 = vunpack.c.l.b16 %v2209
        %v2226 = vunpack.c.l.b16 %v2210
        %v2227 = vunpack.c.l.b16 %v2211
        %v2228 = vunpack.c.l.b16 %v2212
        %v2229 = vunpack.c.l.b16 %v2213
        %v2230 = vunpack.c.l.b16 %v2214
        %v2231 = vunpack.c.l.b16 %v2215
        %v2232 = vpack.c.b16 %v2225, %v2224
        %v2233 = vpack.c.b16 %v2227, %v2226
        %v2234 = vpack.c.b16 %v2229, %v2228
        %v2235 = vpack.c.b16 %v2231, %v2230
        %vm2240 = vcmask 523264
        %v2242 = vsel %vm2240, %v2207, 0
        %2244 = vmatpush.bf16.msra.mxu0 0
        %2245 = vmatpush.bf16.msra.mxu0 0
        %2246 = vmatpush.bf16.msra.mxu0 0
        %2247 = vmatpush.bf16.msra.mxu0 0
        %2248 = vmatpush.bf16.msra.mxu0 %v2235
        %2249 = vmatpush.bf16.msra.mxu0 %v2234
        %2250 = vmatpush.bf16.msra.mxu0 %v2233
        %2251 = vmatpush.bf16.msra.mxu0 %v2232
        %2252 = vmatmul.bf16.gmra.mxu0 %v2242
        %v2253 = vpop.f32.mrf.mxu0
        %v2254 = vadd.f32 %v2168, %v2253
        %v2255 = vpop.f32.mrf.mxu0
        %2256 = vdwg.mxu0
        %v2257 = vld [vmem:[%s18] sm:$0x1]
        %v2258 = vld [vmem:[%s19] sm:$0x1]
        %v2259 = vsel %vm819, %v2254, 0.0
        %2260 = vadd.xlane.f32.xlu0 %v2259
        %v2261 = vpop.xlane.xlu0 %2260
        %v2262 = vmul.f32 %v2261, %v1433
        %v2263 = vsub.f32 %v2254, %v2262
        %v2264 = vmul.f32 %v2263, %v2263
        %v2265 = vsel %vm819, %v2264, 0.0
        %2266 = vadd.xlane.f32.xlu0 %v2265
        %v2267 = vpop.xlane.xlu0 %2266
        %v2268 = vmul.f32 %v2267, %v1433
        %v2269 = vadd.f32 %v2268, 1e-05
        %v2270 = vrsqrt.pop %v2269
        %v2271 = vmul.f32 %v2270, %v2269
        %v2272 = vmul.f32 %v2271, %v2270
        %v2273 = vmul.f32 0.5, %v2272
        %v2274 = vsub.f32 1.5, %v2273
        %v2275 = vmul.f32 %v2270, %v2274
        %vm2276 = vweird.f32 %v2269
        %vm2277 = vweird.f32 %v2270
        %vm2278 = vmor %vm2276, %vm2277
        %v2279 = vsel %vm2278, %v2270, %v2275
        %v2280 = vmul.f32 %v2263, %v2279
        %v2282 = vperm.slane %v2257, 0
        %v2284 = vmul.f32 %v2280, %v2282
        %v2286 = vperm.slane %v2258, 0
        %v2288 = vadd.f32 %v2284, %v2286
        %2289 = vst.msk [vmem:[%s717] sm:$0xff] %vm819, %v2288
        %s2290 = sand.u32 %s488, 1
        %s2291 = scalar_lea.sflag [#allocation3], %s2290
        %s2292 = sand.u32 %s488, 1
        %s2293 = smul.addr %s2292, 8
        %s2294 = scalar_lea.vmem [#allocation2], %s2293
        %s2295 = sand.u32 %s40, 1
        %s2296 = scalar_lea.sflag [#allocation5], %s2295
        %s2297 = sand.u32 %s514, 1
        %s2298 = smul.addr %s2297, 32
        %s2299 = scalar_lea.vmem [#allocation4], %s2298
        %s2300 = sand.u32 %s40, 1
        %s2301 = scalar_lea.sflag [#allocation5], %s2300
        %s2302 = sand.u32 %s540, 1
        %s2303 = smul.addr %s2302, 32
        %s2304 = scalar_lea.vmem [#allocation6], %s2303
        // Predicated region
        $region101: #{decoder_layer.1} parent=99 // pred_check
          %p2305 = pneg %p498
        $region102: #{decoder_layer.1} parent=99 // pred_check_branch
          %2307 = sbr.rel (%p2305) target = $region104
        $region103: #{decoder_layer.1} parent=99 // pred_region
          %2309 = vsyncadd %s2291, 0
          %s2310 = smul.addr %s40, 8
          %s2311 = scalar_lea.hbm %s20, %s2310
          %s2313 = sshll.u32 %s2294, 4
          %s2314 = int_to_ptr.vmem [resolvable:$true] %s2313
          %s2315 = sshll.u32 %s2311, 4
          %s2316 = int_to_ptr.hbm [resolvable:$true] %s2315
          %2318 = dma.vmem_to_hbm [thread:$0]  %s2314, 128, %s2316, %s2291
        $region104: #{decoder_layer.1} parent=99 // pred_fallthru
          _
        // Predicated region
        $region105: #{decoder_layer.1} parent=99 // pred_check
          %p2319 = pneg %p524
        $region106: #{decoder_layer.1} parent=99 // pred_check_branch
          %2321 = sbr.rel (%p2319) target = $region108
        $region107: #{decoder_layer.1} parent=99 // pred_region
          %2323 = vsyncadd %s2296, 0
          %s2324 = smul.addr %s40, 4
          %s2325 = smul.addr %s2324, 8
          %s2326 = scalar_lea.hbm %s21, %s2325
          %s2327 = sshll.u32 %s2299, 4
          %s2328 = int_to_ptr.vmem [resolvable:$true] %s2327
          %s2329 = sshll.u32 %s2326, 4
          %s2330 = int_to_ptr.hbm [resolvable:$true] %s2329
          %2335 = dma.vmem_to_hbm [thread:$0]  %s2328, 512, %s2330, %s2296, 128, 128, 8
        $region108: #{decoder_layer.1} parent=99 // pred_fallthru
          _
        // Predicated region
        $region109: #{decoder_layer.1} parent=99 // pred_check
          %p2336 = pneg %p550
        $region110: #{decoder_layer.1} parent=99 // pred_check_branch
          %2338 = sbr.rel (%p2336) target = $region112
        $region111: #{decoder_layer.1} parent=99 // pred_region
          %2340 = vsyncadd %s2301, 0
          %s2341 = smul.addr %s40, 4
          %s2342 = smul.addr %s2341, 8
          %s2343 = scalar_lea.hbm %s22, %s2342
          %s2344 = sshll.u32 %s2304, 4
          %s2345 = int_to_ptr.vmem [resolvable:$true] %s2344
          %s2346 = sshll.u32 %s2343, 4
          %s2347 = int_to_ptr.hbm [resolvable:$true] %s2346
          %2352 = dma.vmem_to_hbm [thread:$0]  %s2345, 512, %s2347, %s2301, 128, 128, 8
        $region112: #{decoder_layer.1} parent=99 // pred_fallthru
          _
      $region100: #{decoder_layer.1} parent=5 // pred_fallthru
        _
      %p2353 = scmp.le.s32.totalorder 2, %s35
      // Predicated region
      $region113: #{decoder_layer.1} parent=5 // pred_check
        %p2354 = pneg %p2353
      $region114: #{decoder_layer.1} parent=5 // pred_check_branch
        %2356 = sbr.rel (%p2354) target = $region116
      $region115: #{decoder_layer.1} parent=5 // pred_region
        %s2357 = ssub.s32 %s35, 2
        // Predicated region
        $region117: #{decoder_layer.1} parent=115 // pred_check
          %p2358 = pneg %p504
        $region118: #{decoder_layer.1} parent=115 // pred_check_branch
          %2360 = sbr.rel (%p2358) target = $region120
        $region119: #{decoder_layer.1} parent=115 // pred_region
          %s2361 = sand.u32 %s489, 1
          %s2362 = scalar_lea.sflag [#allocation3], %s2361
          %s2363 = sand.u32 %s489, 1
          %s2364 = smul.addr %s2363, 8
          %s2365 = scalar_lea.vmem [#allocation2], %s2364
          %2367 = dma.done %s2362, 128
        $region120: #{decoder_layer.1} parent=115 // pred_fallthru
          _
        // Predicated region
        $region121: #{decoder_layer.1} parent=115 // pred_check
          %p2368 = pneg %p530
        $region122: #{decoder_layer.1} parent=115 // pred_check_branch
          %2370 = sbr.rel (%p2368) target = $region124
        $region123: #{decoder_layer.1} parent=115 // pred_region
          %s2371 = sand.u32 %s41, 1
          %s2372 = scalar_lea.sflag [#allocation5], %s2371
          %s2373 = sand.u32 %s515, 1
          %s2374 = smul.addr %s2373, 32
          %s2375 = scalar_lea.vmem [#allocation4], %s2374
          %2377 = dma.done %s2372, 512
        $region124: #{decoder_layer.1} parent=115 // pred_fallthru
          _
        // Predicated region
        $region125: #{decoder_layer.1} parent=115 // pred_check
          %p2378 = pneg %p556
        $region126: #{decoder_layer.1} parent=115 // pred_check_branch
          %2380 = sbr.rel (%p2378) target = $region128
        $region127: #{decoder_layer.1} parent=115 // pred_region
          %s2381 = sand.u32 %s41, 1
          %s2382 = scalar_lea.sflag [#allocation5], %s2381
          %s2383 = sand.u32 %s541, 1
          %s2384 = smul.addr %s2383, 32
          %s2385 = scalar_lea.vmem [#allocation6], %s2384
          %2387 = dma.done %s2382, 512
        $region128: #{decoder_layer.1} parent=115 // pred_fallthru
          _
      $region116: #{decoder_layer.1} parent=5 // pred_fallthru
        _
    $region6: #{decoder_layer.1} parent=1 // loop_footer
      %s39 = sadd.s32 1, %s35
    $region7: #{decoder_layer.1} parent=1 // loop_footer_branch
      %34 = sbr.rel target = $region3
    $region8: #{decoder_layer.1} parent=1 // loop_exit
      _
    %2388 = vsyncpa [#allocation3], 1
    %s2389 = scalar_lea.sflag [#allocation3], 1
    %2390 = vsyncpa %s2389, 1
    %2391 = vsyncpa [#allocation5], 1
    %s2392 = scalar_lea.sflag [#allocation5], 1
    %2393 = vsyncpa %s2392, 1

</llo_original>
